<compile_context>
chip_gen: v7x
topology: tpu7x:2x2x1
jax: 0.10.0
libtpu: 0.0.40
codegen_flags: <defaults>
</compile_context>

<pallas_src>
import functools

import jax
import jax.numpy as jnp
from jax import lax
from jax.experimental import pallas as pl
from jax.experimental.pallas import tpu as pltpu

EPS = 1e-5
NEG_SLOPE = 0.01


def _leaky_relu(x):
    return jnp.where(x >= 0, x, NEG_SLOPE * x)


def residual_block_kernel(xp_ref, w1_ref, b1_ref, g1_ref, be1_ref,
                          w2_ref, b2_ref, g2_ref, be2_ref,
                          out_ref, s_ref, *, H, W):
    # xp_ref : (CP, NHW)       input, channels (zero-padded to CP) on sublanes,
    #                          pixels flattened dense on lanes.  Also the residual.
    # w*_ref : (CP, 9*CP)      fused im2col weights, columns ordered (tap, cin).
    # b/g/be : (CP, 1)         per-channel conv bias / BN gamma / BN beta.
    # out_ref: (CP, NHW)
    # s_ref  : (9*CP, NHW)     VMEM scratch holding the im2col stack (reused).
    CP, NHW = xp_ref.shape
    inv_npix = 1.0 / NHW  # lanes cover exactly N*H*W real pixels (no spatial pad)

    # --- pixel coordinates & border masks (computed once, shared by both convs) ---
    q = lax.broadcasted_iota(jnp.int32, (CP, NHW), 1)
    if W & (W - 1) == 0:                       # power-of-two fast path (no int div)
        col = q & (W - 1)
        qd = q >> (W.bit_length() - 1)
    else:
        col = q % W
        qd = q // W
    if H & (H - 1) == 0:
        row = qd & (H - 1)
    else:
        row = qd % H
    row_ok_dn = row <= H - 2   # needed when dy == +1
    row_ok_up = row >= 1       # needed when dy == -1
    col_ok_rt = col <= W - 2   # needed when dx == +1
    col_ok_lf = col >= 1       # needed when dx == -1

    # --- runtime calibration of pltpu.roll's rotation convention ----------------
    # If roll matches jnp.roll (data moves to higher indices), rolling the lane
    # iota by 1 gives (q - 1) mod NHW; otherwise it gives (q + 1) mod NHW.
    qf = q.astype(jnp.float32)
    probe = pltpu.roll(qf, 1, axis=1)
    is_fwd = probe == jnp.where(q == 0, float(NHW - 1), qf - 1.0)  # all-T or all-F

    # tap table: (scratch slot, dy, dx, flat lane offset)
    taps = [(ky * 3 + kx, ky - 1, kx - 1, (ky - 1) * W + (kx - 1))
            for ky in range(3) for kx in range(3)]
    # The tap-offset set is symmetric, so both direction hypotheses draw from the
    # same 9 rolled copies -> still only 8 rolls per conv.
    shift_amounts = sorted({(-d) % NHW for (_, _, _, d) in taps})

    def im2col(x):
        rolled = {s: (x if s == 0 else pltpu.roll(x, s, axis=1))
                  for s in shift_amounts}
        for t, dy, dx, d in taps:
            if d == 0:
                shifted = x
            else:
                shifted = jnp.where(is_fwd,
                                    rolled[(-d) % NHW],   # jnp.roll convention
                                    rolled[d % NHW])      # opposite convention
            mask = None
            for ok, use in ((row_ok_dn, dy == 1), (row_ok_up, dy == -1),
                            (col_ok_rt, dx == 1), (col_ok_lf, dx == -1)):
                if use:
                    mask = ok if mask is None else (mask & ok)
            if mask is not None:
                shifted = jnp.where(mask, shifted, 0.0)
            s_ref[t * CP:(t + 1) * CP, :] = shifted

    def conv(w_ref, b_ref):
        # single fused-K MXU matmul per conv: (CP, 9*CP) @ (9*CP, NHW)
        return jnp.dot(w_ref[...], s_ref[...],
                       preferred_element_type=jnp.float32) + b_ref[...]

    def batchnorm(z, g_ref, be_ref):
        # one-pass batch statistics (biased variance), per channel (per row)
        mean = jnp.sum(z, axis=1, keepdims=True) * inv_npix
        ex2 = jnp.sum(z * z, axis=1, keepdims=True) * inv_npix
        var = ex2 - mean * mean
        return (z - mean) * lax.rsqrt(var + EPS) * g_ref[...] + be_ref[...]

    x = xp_ref[...]

    # conv1 -> bn1 -> leaky_relu
    im2col(x)
    y1 = _leaky_relu(batchnorm(conv(w1_ref, b1_ref), g1_ref, be1_ref))

    # conv2 -> bn2
    im2col(y1)
    y2 = batchnorm(conv(w2_ref, b2_ref), g2_ref, be2_ref)

    # residual add + final leaky_relu
    out_ref[...] = _leaky_relu(y2 + x).astype(out_ref.dtype)


@jax.jit
def residual_block(x_nchw, params):
    """x_nchw: (N, C, H, W) float32. Returns (N, C, H, W)."""
    w1, b1, g1, be1, w2, b2, g2, be2 = params
    N, C, H, W = x_nchw.shape
    CP = max(8, ((C + 7) // 8) * 8)        # channels padded to a sublane multiple
    NHW = N * H * W

    # NCHW -> (C, N*H*W): channels on sublanes, pixels dense on lanes.
    x_c = jnp.transpose(x_nchw, (1, 0, 2, 3)).reshape(C, NHW)
    xp = jnp.pad(x_c.astype(jnp.float32), ((0, CP - C), (0, 0)))

    def prep_w(wt):
        # (Cout, Cin, 3, 3) -> (CP, 9*CP); columns ordered (tap-major, cin-minor)
        # to match the in-kernel im2col stacking; zero rows/cols for padded chans.
        wt = jnp.transpose(wt.astype(jnp.float32), (0, 2, 3, 1))   # (Cout,3,3,Cin)
        wt = jnp.pad(wt, ((0, CP - C), (0, 0), (0, 0), (0, CP - C)))
        return wt.reshape(CP, 9 * CP)

    def prep_c(v):
        return jnp.pad(v.astype(jnp.float32), (0, CP - C)).reshape(CP, 1)

    args = (xp,
            prep_w(w1), prep_c(b1), prep_c(g1), prep_c(be1),
            prep_w(w2), prep_c(b2), prep_c(g2), prep_c(be2))

    vmem = pl.BlockSpec(memory_space=pltpu.MemorySpace.VMEM)
    flops = int(2 * (2 * NHW * 9 * CP * CP) + 24 * CP * NHW)
    bytes_accessed = int(4 * (2 * CP * NHW + 2 * CP * 9 * CP + 6 * CP))
    kernel = functools.partial(residual_block_kernel, H=H, W=W)

    out_flat = pl.pallas_call(
        kernel,
        out_shape=jax.ShapeDtypeStruct((CP, NHW), jnp.float32),
        in_specs=[vmem] * len(args),
        out_specs=vmem,
        scratch_shapes=[pltpu.VMEM((9 * CP, NHW), jnp.float32)],
        cost_estimate=pl.CostEstimate(flops=flops, transcendentals=2 * CP,
                                      bytes_accessed=bytes_accessed),
    )(*args)

    out = jnp.transpose(out_flat[:C].reshape(C, N, H, W), (1, 0, 2, 3))
    return out.astype(x_nchw.dtype)


def reference(x_nchw, params):
    """Pure-JAX reference (same math) for verification."""
    w1, b1, g1, be1, w2, b2, g2, be2 = params

    def conv(x, w, b):
        y = lax.conv_general_dilated(
            x, w, window_strides=(1, 1), padding=((1, 1), (1, 1)),
            dimension_numbers=("NCHW", "OIHW", "NCHW"))
        return y + b[None, :, None, None]

    def bn(x, g, be):
        mean = jnp.mean(x, axis=(0, 2, 3), keepdims=True)
        var = jnp.mean((x - mean) ** 2, axis=(0, 2, 3), keepdims=True)
        return ((x - mean) * lax.rsqrt(var + EPS)
                * g[None, :, None, None] + be[None, :, None, None])

    h = _leaky_relu(bn(conv(x_nchw, w1, b1), g1, be1))
    h = bn(conv(h, w2, b2), g2, be2)
    return _leaky_relu(h + x_nchw)


if __name__ == "__main__":
    N, C, H, W = 2, 4, 16, 16
    key = jax.random.PRNGKey(0)
    kx, k1, k2, k3, k4, k5, k6, k7, k8 = jax.random.split(key, 9)

    x = jax.random.normal(kx, (N, C, H, W), jnp.float32)

    params = (
        jax.random.normal(k1, (C, C, 3, 3), jnp.float32) * 0.1,   # conv1.weight
        jax.random.normal(k2, (C,), jnp.float32) * 0.1,           # conv1.bias
        1.0 + jax.random.normal(k3, (C,), jnp.float32) * 0.1,     # bn1.weight
        jax.random.normal(k4, (C,), jnp.float32) * 0.1,           # bn1.bias
        jax.random.normal(k5, (C, C, 3, 3), jnp.float32) * 0.1,   # conv2.weight
        jax.random.normal(k6, (C,), jnp.float32) * 0.1,           # conv2.bias
        1.0 + jax.random.normal(k7, (C,), jnp.float32) * 0.1,     # bn2.weight
        jax.random.normal(k8, (C,), jnp.float32) * 0.1,           # bn2.bias
    )

    out = residual_block(x, params)
    out = jax.block_until_ready(out)

    ref = reference(x, params)
    assert out.shape == (N, C, H, W)
    assert jnp.allclose(out, ref, atol=1e-3, rtol=1e-3), (
        f"max abs diff {jnp.max(jnp.abs(out - ref))}")

    print("KERNEL_OK")
</pallas_src>

<mosaic_0001>
module attributes {stable_mosaic.version = 11 : i64} {
  func.func @residual_block_kernel(%arg0: memref<8x512xf32, #tpu.memory_space<vmem>>, %arg1: memref<8x72xf32, #tpu.memory_space<vmem>>, %arg2: memref<8x1xf32, #tpu.memory_space<vmem>>, %arg3: memref<8x1xf32, #tpu.memory_space<vmem>>, %arg4: memref<8x1xf32, #tpu.memory_space<vmem>>, %arg5: memref<8x72xf32, #tpu.memory_space<vmem>>, %arg6: memref<8x1xf32, #tpu.memory_space<vmem>>, %arg7: memref<8x1xf32, #tpu.memory_space<vmem>>, %arg8: memref<8x1xf32, #tpu.memory_space<vmem>>, %arg9: memref<8x512xf32, #tpu.memory_space<vmem>>, %arg10: memref<72x512xf32, #tpu.memory_space<vmem>>) attributes {dimension_semantics = [], scalar_prefetch = 0 : i64, scratch_operands = 1 : i64, tpu.core_type = #tpu.core_type<tc>} {
    %0 = tpu.iota {dimensions = array<i32: 1>} : vector<8x512xi32>
    %c15_i32 = arith.constant 15 : i32
    %1 = vector.broadcast %c15_i32 : i32 to vector<8x512xi32>
    %2 = arith.andi %0, %1 : vector<8x512xi32>
    %c4_i32 = arith.constant 4 : i32
    %3 = vector.broadcast %c4_i32 : i32 to vector<8x512xi32>
    %4 = arith.shrsi %0, %3 : vector<8x512xi32>
    %c15_i32_0 = arith.constant 15 : i32
    %5 = vector.broadcast %c15_i32_0 : i32 to vector<8x512xi32>
    %6 = arith.andi %4, %5 : vector<8x512xi32>
    %c14_i32 = arith.constant 14 : i32
    %7 = vector.broadcast %c14_i32 : i32 to vector<8x512xi32>
    %8 = arith.cmpi sle, %6, %7 : vector<8x512xi32>
    %c1_i32 = arith.constant 1 : i32
    %9 = vector.broadcast %c1_i32 : i32 to vector<8x512xi32>
    %10 = arith.cmpi sge, %6, %9 : vector<8x512xi32>
    %c14_i32_1 = arith.constant 14 : i32
    %11 = vector.broadcast %c14_i32_1 : i32 to vector<8x512xi32>
    %12 = arith.cmpi sle, %2, %11 : vector<8x512xi32>
    %c1_i32_2 = arith.constant 1 : i32
    %13 = vector.broadcast %c1_i32_2 : i32 to vector<8x512xi32>
    %14 = arith.cmpi sge, %2, %13 : vector<8x512xi32>
    %15 = arith.sitofp %0 : vector<8x512xi32> to vector<8x512xf32>
    %c1_i32_3 = arith.constant 1 : i32
    %16 = tpu.dynamic_rotate %15 by %c1_i32_3 dim 1 : vector<8x512xf32>, i32 -> vector<8x512xf32>
    %c0_i32 = arith.constant 0 : i32
    %17 = vector.broadcast %c0_i32 : i32 to vector<8x512xi32>
    %18 = arith.cmpi eq, %0, %17 : vector<8x512xi32>
    %cst = arith.constant 1.000000e+00 : f32
    %19 = vector.broadcast %cst : f32 to vector<8x512xf32>
    %20 = arith.subf %15, %19 : vector<8x512xf32>
    %cst_4 = arith.constant 5.110000e+02 : f32
    %21 = vector.broadcast %cst_4 : f32 to vector<8x512xf32>
    %22 = arith.select %18, %21, %20 : vector<8x512xi1>, vector<8x512xf32>
    %23 = arith.cmpf oeq, %16, %22 : vector<8x512xf32>
    %c0 = arith.constant 0 : index
    %c0_5 = arith.constant 0 : index
    %24 = vector.load %arg0[%c0, %c0_5] : memref<8x512xf32, #tpu.memory_space<vmem>>, vector<8x512xf32>
    %c1_i32_6 = arith.constant 1 : i32
    %25 = tpu.dynamic_rotate %24 by %c1_i32_6 dim 1 : vector<8x512xf32>, i32 -> vector<8x512xf32>
    %c15_i32_7 = arith.constant 15 : i32
    %26 = tpu.dynamic_rotate %24 by %c15_i32_7 dim 1 : vector<8x512xf32>, i32 -> vector<8x512xf32>
    %c16_i32 = arith.constant 16 : i32
    %27 = tpu.dynamic_rotate %24 by %c16_i32 dim 1 : vector<8x512xf32>, i32 -> vector<8x512xf32>
    %c17_i32 = arith.constant 17 : i32
    %28 = tpu.dynamic_rotate %24 by %c17_i32 dim 1 : vector<8x512xf32>, i32 -> vector<8x512xf32>
    %c495_i32 = arith.constant 495 : i32
    %29 = tpu.dynamic_rotate %24 by %c495_i32 dim 1 : vector<8x512xf32>, i32 -> vector<8x512xf32>
    %c496_i32 = arith.constant 496 : i32
    %30 = tpu.dynamic_rotate %24 by %c496_i32 dim 1 : vector<8x512xf32>, i32 -> vector<8x512xf32>
    %c497_i32 = arith.constant 497 : i32
    %31 = tpu.dynamic_rotate %24 by %c497_i32 dim 1 : vector<8x512xf32>, i32 -> vector<8x512xf32>
    %c511_i32 = arith.constant 511 : i32
    %32 = tpu.dynamic_rotate %24 by %c511_i32 dim 1 : vector<8x512xf32>, i32 -> vector<8x512xf32>
    %33 = arith.select %23, %28, %29 : vector<8x512xi1>, vector<8x512xf32>
    %34 = arith.andi %10, %14 : vector<8x512xi1>
    %cst_8 = arith.constant 0.000000e+00 : f32
    %35 = vector.broadcast %cst_8 : f32 to vector<8x512xf32>
    %36 = arith.select %34, %33, %35 : vector<8x512xi1>, vector<8x512xf32>
    %c0_9 = arith.constant 0 : index
    %c0_10 = arith.constant 0 : index
    %37 = vector.load %arg10[%c0_9, %c0_10] : memref<72x512xf32, #tpu.memory_space<vmem>>, vector<8x512xf32>
    tpu.vector_store %arg10[%c0_9, %c0_10], %36 {strides = array<i32>} : memref<72x512xf32, #tpu.memory_space<vmem>>, vector<8x512xf32>,
    %38 = arith.select %23, %27, %30 : vector<8x512xi1>, vector<8x512xf32>
    %cst_11 = arith.constant 0.000000e+00 : f32
    %39 = vector.broadcast %cst_11 : f32 to vector<8x512xf32>
    %40 = arith.select %10, %38, %39 : vector<8x512xi1>, vector<8x512xf32>
    %c8 = arith.constant 8 : index
    %c0_12 = arith.constant 0 : index
    %41 = vector.load %arg10[%c8, %c0_12] : memref<72x512xf32, #tpu.memory_space<vmem>>, vector<8x512xf32>
    tpu.vector_store %arg10[%c8, %c0_12], %40 {strides = array<i32>} : memref<72x512xf32, #tpu.memory_space<vmem>>, vector<8x512xf32>,
    %42 = arith.select %23, %26, %31 : vector<8x512xi1>, vector<8x512xf32>
    %43 = arith.andi %10, %12 : vector<8x512xi1>
    %cst_13 = arith.constant 0.000000e+00 : f32
    %44 = vector.broadcast %cst_13 : f32 to vector<8x512xf32>
    %45 = arith.select %43, %42, %44 : vector<8x512xi1>, vector<8x512xf32>
    %c16 = arith.constant 16 : index
    %c0_14 = arith.constant 0 : index
    %46 = vector.load %arg10[%c16, %c0_14] : memref<72x512xf32, #tpu.memory_space<vmem>>, vector<8x512xf32>
    tpu.vector_store %arg10[%c16, %c0_14], %45 {strides = array<i32>} : memref<72x512xf32, #tpu.memory_space<vmem>>, vector<8x512xf32>,
    %47 = arith.select %23, %25, %32 : vector<8x512xi1>, vector<8x512xf32>
    %cst_15 = arith.constant 0.000000e+00 : f32
    %48 = vector.broadcast %cst_15 : f32 to vector<8x512xf32>
    %49 = arith.select %14, %47, %48 : vector<8x512xi1>, vector<8x512xf32>
    %c24 = arith.constant 24 : index
    %c0_16 = arith.constant 0 : index
    %50 = vector.load %arg10[%c24, %c0_16] : memref<72x512xf32, #tpu.memory_space<vmem>>, vector<8x512xf32>
    tpu.vector_store %arg10[%c24, %c0_16], %49 {strides = array<i32>} : memref<72x512xf32, #tpu.memory_space<vmem>>, vector<8x512xf32>,
    %c32 = arith.constant 32 : index
    %c0_17 = arith.constant 0 : index
    %51 = vector.load %arg10[%c32, %c0_17] : memref<72x512xf32, #tpu.memory_space<vmem>>, vector<8x512xf32>
    tpu.vector_store %arg10[%c32, %c0_17], %24 {strides = array<i32>} : memref<72x512xf32, #tpu.memory_space<vmem>>, vector<8x512xf32>,
    %52 = arith.select %23, %32, %25 : vector<8x512xi1>, vector<8x512xf32>
    %cst_18 = arith.constant 0.000000e+00 : f32
    %53 = vector.broadcast %cst_18 : f32 to vector<8x512xf32>
    %54 = arith.select %12, %52, %53 : vector<8x512xi1>, vector<8x512xf32>
    %c40 = arith.constant 40 : index
    %c0_19 = arith.constant 0 : index
    %55 = vector.load %arg10[%c40, %c0_19] : memref<72x512xf32, #tpu.memory_space<vmem>>, vector<8x512xf32>
    tpu.vector_store %arg10[%c40, %c0_19], %54 {strides = array<i32>} : memref<72x512xf32, #tpu.memory_space<vmem>>, vector<8x512xf32>,
    %56 = arith.select %23, %31, %26 : vector<8x512xi1>, vector<8x512xf32>
    %57 = arith.andi %8, %14 : vector<8x512xi1>
    %cst_20 = arith.constant 0.000000e+00 : f32
    %58 = vector.broadcast %cst_20 : f32 to vector<8x512xf32>
    %59 = arith.select %57, %56, %58 : vector<8x512xi1>, vector<8x512xf32>
    %c48 = arith.constant 48 : index
    %c0_21 = arith.constant 0 : index
    %60 = vector.load %arg10[%c48, %c0_21] : memref<72x512xf32, #tpu.memory_space<vmem>>, vector<8x512xf32>
    tpu.vector_store %arg10[%c48, %c0_21], %59 {strides = array<i32>} : memref<72x512xf32, #tpu.memory_space<vmem>>, vector<8x512xf32>,
    %61 = arith.select %23, %30, %27 : vector<8x512xi1>, vector<8x512xf32>
    %cst_22 = arith.constant 0.000000e+00 : f32
    %62 = vector.broadcast %cst_22 : f32 to vector<8x512xf32>
    %63 = arith.select %8, %61, %62 : vector<8x512xi1>, vector<8x512xf32>
    %c56 = arith.constant 56 : index
    %c0_23 = arith.constant 0 : index
    %64 = vector.load %arg10[%c56, %c0_23] : memref<72x512xf32, #tpu.memory_space<vmem>>, vector<8x512xf32>
    tpu.vector_store %arg10[%c56, %c0_23], %63 {strides = array<i32>} : memref<72x512xf32, #tpu.memory_space<vmem>>, vector<8x512xf32>,
    %65 = arith.select %23, %29, %28 : vector<8x512xi1>, vector<8x512xf32>
    %66 = arith.andi %8, %12 : vector<8x512xi1>
    %cst_24 = arith.constant 0.000000e+00 : f32
    %67 = vector.broadcast %cst_24 : f32 to vector<8x512xf32>
    %68 = arith.select %66, %65, %67 : vector<8x512xi1>, vector<8x512xf32>
    %c64 = arith.constant 64 : index
    %c0_25 = arith.constant 0 : index
    %69 = vector.load %arg10[%c64, %c0_25] : memref<72x512xf32, #tpu.memory_space<vmem>>, vector<8x512xf32>
    tpu.vector_store %arg10[%c64, %c0_25], %68 {strides = array<i32>} : memref<72x512xf32, #tpu.memory_space<vmem>>, vector<8x512xf32>,
    %c0_26 = arith.constant 0 : index
    %c0_27 = arith.constant 0 : index
    %70 = vector.load %arg1[%c0_26, %c0_27] : memref<8x72xf32, #tpu.memory_space<vmem>>, vector<8x72xf32>
    %c0_28 = arith.constant 0 : index
    %c0_29 = arith.constant 0 : index
    %71 = vector.load %arg10[%c0_28, %c0_29] : memref<72x512xf32, #tpu.memory_space<vmem>>, vector<72x512xf32>
    %cst_30 = arith.constant dense<0.000000e+00> : vector<8x512xf32>
    %72 = tpu.matmul %70, %71, %cst_30 {dimension_numbers = #tpu.dot_dimension_numbers<[1], [0], [0], [1], [0, 0, 1, 1], [], []>} : vector<8x72xf32>, vector<72x512xf32>, vector<8x512xf32> -> vector<8x512xf32>
    %c0_31 = arith.constant 0 : index
    %c0_32 = arith.constant 0 : index
    %73 = vector.load %arg2[%c0_31, %c0_32] : memref<8x1xf32, #tpu.memory_space<vmem>>, vector<8x1xf32>
    %74 = vector.broadcast %73 : vector<8x1xf32> to vector<8x512xf32>
    %75 = arith.addf %72, %74 : vector<8x512xf32>
    %cst_33 = arith.constant dense<0.000000e+00> : vector<8xf32>
    %76 = vector.multi_reduction <add>, %75, %cst_33 [1] : vector<8x512xf32> to vector<8xf32>
    %77 = vector.shape_cast %76 : vector<8xf32> to vector<8x1xf32>
    %cst_34 = arith.constant 0.001953125 : f32
    %78 = vector.broadcast %cst_34 : f32 to vector<8x1xf32>
    %79 = arith.mulf %77, %78 : vector<8x1xf32>
    %80 = arith.mulf %75, %75 : vector<8x512xf32>
    %cst_35 = arith.constant dense<0.000000e+00> : vector<8xf32>
    %81 = vector.multi_reduction <add>, %80, %cst_35 [1] : vector<8x512xf32> to vector<8xf32>
    %82 = vector.shape_cast %81 : vector<8xf32> to vector<8x1xf32>
    %cst_36 = arith.constant 0.001953125 : f32
    %83 = vector.broadcast %cst_36 : f32 to vector<8x1xf32>
    %84 = arith.mulf %82, %83 : vector<8x1xf32>
    %85 = arith.mulf %79, %79 : vector<8x1xf32>
    %86 = arith.subf %84, %85 : vector<8x1xf32>
    %87 = vector.broadcast %79 : vector<8x1xf32> to vector<8x512xf32>
    %88 = arith.subf %75, %87 : vector<8x512xf32>
    %cst_37 = arith.constant 9.99999974E-6 : f32
    %89 = vector.broadcast %cst_37 : f32 to vector<8x1xf32>
    %90 = arith.addf %86, %89 : vector<8x1xf32>
    %91 = math.rsqrt %90 : vector<8x1xf32>
    %92 = vector.broadcast %91 : vector<8x1xf32> to vector<8x512xf32>
    %93 = arith.mulf %88, %92 : vector<8x512xf32>
    %c0_38 = arith.constant 0 : index
    %c0_39 = arith.constant 0 : index
    %94 = vector.load %arg3[%c0_38, %c0_39] : memref<8x1xf32, #tpu.memory_space<vmem>>, vector<8x1xf32>
    %95 = vector.broadcast %94 : vector<8x1xf32> to vector<8x512xf32>
    %96 = arith.mulf %93, %95 : vector<8x512xf32>
    %c0_40 = arith.constant 0 : index
    %c0_41 = arith.constant 0 : index
    %97 = vector.load %arg4[%c0_40, %c0_41] : memref<8x1xf32, #tpu.memory_space<vmem>>, vector<8x1xf32>
    %98 = vector.broadcast %97 : vector<8x1xf32> to vector<8x512xf32>
    %99 = arith.addf %96, %98 : vector<8x512xf32>
    %cst_42 = arith.constant 0.000000e+00 : f32
    %100 = vector.broadcast %cst_42 : f32 to vector<8x512xf32>
    %101 = arith.cmpf oge, %99, %100 : vector<8x512xf32>
    %cst_43 = arith.constant 0.00999999977 : f32
    %102 = vector.broadcast %cst_43 : f32 to vector<8x512xf32>
    %103 = arith.mulf %102, %99 : vector<8x512xf32>
    %104 = arith.select %101, %99, %103 : vector<8x512xi1>, vector<8x512xf32>
    %c1_i32_44 = arith.constant 1 : i32
    %105 = tpu.dynamic_rotate %104 by %c1_i32_44 dim 1 : vector<8x512xf32>, i32 -> vector<8x512xf32>
    %c15_i32_45 = arith.constant 15 : i32
    %106 = tpu.dynamic_rotate %104 by %c15_i32_45 dim 1 : vector<8x512xf32>, i32 -> vector<8x512xf32>
    %c16_i32_46 = arith.constant 16 : i32
    %107 = tpu.dynamic_rotate %104 by %c16_i32_46 dim 1 : vector<8x512xf32>, i32 -> vector<8x512xf32>
    %c17_i32_47 = arith.constant 17 : i32
    %108 = tpu.dynamic_rotate %104 by %c17_i32_47 dim 1 : vector<8x512xf32>, i32 -> vector<8x512xf32>
    %c495_i32_48 = arith.constant 495 : i32
    %109 = tpu.dynamic_rotate %104 by %c495_i32_48 dim 1 : vector<8x512xf32>, i32 -> vector<8x512xf32>
    %c496_i32_49 = arith.constant 496 : i32
    %110 = tpu.dynamic_rotate %104 by %c496_i32_49 dim 1 : vector<8x512xf32>, i32 -> vector<8x512xf32>
    %c497_i32_50 = arith.constant 497 : i32
    %111 = tpu.dynamic_rotate %104 by %c497_i32_50 dim 1 : vector<8x512xf32>, i32 -> vector<8x512xf32>
    %c511_i32_51 = arith.constant 511 : i32
    %112 = tpu.dynamic_rotate %104 by %c511_i32_51 dim 1 : vector<8x512xf32>, i32 -> vector<8x512xf32>
    %113 = arith.select %23, %108, %109 : vector<8x512xi1>, vector<8x512xf32>
    %114 = arith.andi %10, %14 : vector<8x512xi1>
    %cst_52 = arith.constant 0.000000e+00 : f32
    %115 = vector.broadcast %cst_52 : f32 to vector<8x512xf32>
    %116 = arith.select %114, %113, %115 : vector<8x512xi1>, vector<8x512xf32>
    %c0_53 = arith.constant 0 : index
    %c0_54 = arith.constant 0 : index
    %117 = vector.load %arg10[%c0_53, %c0_54] : memref<72x512xf32, #tpu.memory_space<vmem>>, vector<8x512xf32>
    tpu.vector_store %arg10[%c0_53, %c0_54], %116 {strides = array<i32>} : memref<72x512xf32, #tpu.memory_space<vmem>>, vector<8x512xf32>,
    %118 = arith.select %23, %107, %110 : vector<8x512xi1>, vector<8x512xf32>
    %cst_55 = arith.constant 0.000000e+00 : f32
    %119 = vector.broadcast %cst_55 : f32 to vector<8x512xf32>
    %120 = arith.select %10, %118, %119 : vector<8x512xi1>, vector<8x512xf32>
    %c8_56 = arith.constant 8 : index
    %c0_57 = arith.constant 0 : index
    %121 = vector.load %arg10[%c8_56, %c0_57] : memref<72x512xf32, #tpu.memory_space<vmem>>, vector<8x512xf32>
    tpu.vector_store %arg10[%c8_56, %c0_57], %120 {strides = array<i32>} : memref<72x512xf32, #tpu.memory_space<vmem>>, vector<8x512xf32>,
    %122 = arith.select %23, %106, %111 : vector<8x512xi1>, vector<8x512xf32>
    %123 = arith.andi %10, %12 : vector<8x512xi1>
    %cst_58 = arith.constant 0.000000e+00 : f32
    %124 = vector.broadcast %cst_58 : f32 to vector<8x512xf32>
    %125 = arith.select %123, %122, %124 : vector<8x512xi1>, vector<8x512xf32>
    %c16_59 = arith.constant 16 : index
    %c0_60 = arith.constant 0 : index
    %126 = vector.load %arg10[%c16_59, %c0_60] : memref<72x512xf32, #tpu.memory_space<vmem>>, vector<8x512xf32>
    tpu.vector_store %arg10[%c16_59, %c0_60], %125 {strides = array<i32>} : memref<72x512xf32, #tpu.memory_space<vmem>>, vector<8x512xf32>,
    %127 = arith.select %23, %105, %112 : vector<8x512xi1>, vector<8x512xf32>
    %cst_61 = arith.constant 0.000000e+00 : f32
    %128 = vector.broadcast %cst_61 : f32 to vector<8x512xf32>
    %129 = arith.select %14, %127, %128 : vector<8x512xi1>, vector<8x512xf32>
    %c24_62 = arith.constant 24 : index
    %c0_63 = arith.constant 0 : index
    %130 = vector.load %arg10[%c24_62, %c0_63] : memref<72x512xf32, #tpu.memory_space<vmem>>, vector<8x512xf32>
    tpu.vector_store %arg10[%c24_62, %c0_63], %129 {strides = array<i32>} : memref<72x512xf32, #tpu.memory_space<vmem>>, vector<8x512xf32>,
    %c32_64 = arith.constant 32 : index
    %c0_65 = arith.constant 0 : index
    %131 = vector.load %arg10[%c32_64, %c0_65] : memref<72x512xf32, #tpu.memory_space<vmem>>, vector<8x512xf32>
    tpu.vector_store %arg10[%c32_64, %c0_65], %104 {strides = array<i32>} : memref<72x512xf32, #tpu.memory_space<vmem>>, vector<8x512xf32>,
    %132 = arith.select %23, %112, %105 : vector<8x512xi1>, vector<8x512xf32>
    %cst_66 = arith.constant 0.000000e+00 : f32
    %133 = vector.broadcast %cst_66 : f32 to vector<8x512xf32>
    %134 = arith.select %12, %132, %133 : vector<8x512xi1>, vector<8x512xf32>
    %c40_67 = arith.constant 40 : index
    %c0_68 = arith.constant 0 : index
    %135 = vector.load %arg10[%c40_67, %c0_68] : memref<72x512xf32, #tpu.memory_space<vmem>>, vector<8x512xf32>
    tpu.vector_store %arg10[%c40_67, %c0_68], %134 {strides = array<i32>} : memref<72x512xf32, #tpu.memory_space<vmem>>, vector<8x512xf32>,
    %136 = arith.select %23, %111, %106 : vector<8x512xi1>, vector<8x512xf32>
    %137 = arith.andi %8, %14 : vector<8x512xi1>
    %cst_69 = arith.constant 0.000000e+00 : f32
    %138 = vector.broadcast %cst_69 : f32 to vector<8x512xf32>
    %139 = arith.select %137, %136, %138 : vector<8x512xi1>, vector<8x512xf32>
    %c48_70 = arith.constant 48 : index
    %c0_71 = arith.constant 0 : index
    %140 = vector.load %arg10[%c48_70, %c0_71] : memref<72x512xf32, #tpu.memory_space<vmem>>, vector<8x512xf32>
    tpu.vector_store %arg10[%c48_70, %c0_71], %139 {strides = array<i32>} : memref<72x512xf32, #tpu.memory_space<vmem>>, vector<8x512xf32>,
    %141 = arith.select %23, %110, %107 : vector<8x512xi1>, vector<8x512xf32>
    %cst_72 = arith.constant 0.000000e+00 : f32
    %142 = vector.broadcast %cst_72 : f32 to vector<8x512xf32>
    %143 = arith.select %8, %141, %142 : vector<8x512xi1>, vector<8x512xf32>
    %c56_73 = arith.constant 56 : index
    %c0_74 = arith.constant 0 : index
    %144 = vector.load %arg10[%c56_73, %c0_74] : memref<72x512xf32, #tpu.memory_space<vmem>>, vector<8x512xf32>
    tpu.vector_store %arg10[%c56_73, %c0_74], %143 {strides = array<i32>} : memref<72x512xf32, #tpu.memory_space<vmem>>, vector<8x512xf32>,
    %145 = arith.select %23, %109, %108 : vector<8x512xi1>, vector<8x512xf32>
    %146 = arith.andi %8, %12 : vector<8x512xi1>
    %cst_75 = arith.constant 0.000000e+00 : f32
    %147 = vector.broadcast %cst_75 : f32 to vector<8x512xf32>
    %148 = arith.select %146, %145, %147 : vector<8x512xi1>, vector<8x512xf32>
    %c64_76 = arith.constant 64 : index
    %c0_77 = arith.constant 0 : index
    %149 = vector.load %arg10[%c64_76, %c0_77] : memref<72x512xf32, #tpu.memory_space<vmem>>, vector<8x512xf32>
    tpu.vector_store %arg10[%c64_76, %c0_77], %148 {strides = array<i32>} : memref<72x512xf32, #tpu.memory_space<vmem>>, vector<8x512xf32>,
    %c0_78 = arith.constant 0 : index
    %c0_79 = arith.constant 0 : index
    %150 = vector.load %arg5[%c0_78, %c0_79] : memref<8x72xf32, #tpu.memory_space<vmem>>, vector<8x72xf32>
    %c0_80 = arith.constant 0 : index
    %c0_81 = arith.constant 0 : index
    %151 = vector.load %arg10[%c0_80, %c0_81] : memref<72x512xf32, #tpu.memory_space<vmem>>, vector<72x512xf32>
    %cst_82 = arith.constant dense<0.000000e+00> : vector<8x512xf32>
    %152 = tpu.matmul %150, %151, %cst_82 {dimension_numbers = #tpu.dot_dimension_numbers<[1], [0], [0], [1], [0, 0, 1, 1], [], []>} : vector<8x72xf32>, vector<72x512xf32>, vector<8x512xf32> -> vector<8x512xf32>
    %c0_83 = arith.constant 0 : index
    %c0_84 = arith.constant 0 : index
    %153 = vector.load %arg6[%c0_83, %c0_84] : memref<8x1xf32, #tpu.memory_space<vmem>>, vector<8x1xf32>
    %154 = vector.broadcast %153 : vector<8x1xf32> to vector<8x512xf32>
    %155 = arith.addf %152, %154 : vector<8x512xf32>
    %cst_85 = arith.constant dense<0.000000e+00> : vector<8xf32>
    %156 = vector.multi_reduction <add>, %155, %cst_85 [1] : vector<8x512xf32> to vector<8xf32>
    %157 = vector.shape_cast %156 : vector<8xf32> to vector<8x1xf32>
    %cst_86 = arith.constant 0.001953125 : f32
    %158 = vector.broadcast %cst_86 : f32 to vector<8x1xf32>
    %159 = arith.mulf %157, %158 : vector<8x1xf32>
    %160 = arith.mulf %155, %155 : vector<8x512xf32>
    %cst_87 = arith.constant dense<0.000000e+00> : vector<8xf32>
    %161 = vector.multi_reduction <add>, %160, %cst_87 [1] : vector<8x512xf32> to vector<8xf32>
    %162 = vector.shape_cast %161 : vector<8xf32> to vector<8x1xf32>
    %cst_88 = arith.constant 0.001953125 : f32
    %163 = vector.broadcast %cst_88 : f32 to vector<8x1xf32>
    %164 = arith.mulf %162, %163 : vector<8x1xf32>
    %165 = arith.mulf %159, %159 : vector<8x1xf32>
    %166 = arith.subf %164, %165 : vector<8x1xf32>
    %167 = vector.broadcast %159 : vector<8x1xf32> to vector<8x512xf32>
    %168 = arith.subf %155, %167 : vector<8x512xf32>
    %cst_89 = arith.constant 9.99999974E-6 : f32
    %169 = vector.broadcast %cst_89 : f32 to vector<8x1xf32>
    %170 = arith.addf %166, %169 : vector<8x1xf32>
    %171 = math.rsqrt %170 : vector<8x1xf32>
    %172 = vector.broadcast %171 : vector<8x1xf32> to vector<8x512xf32>
    %173 = arith.mulf %168, %172 : vector<8x512xf32>
    %c0_90 = arith.constant 0 : index
    %c0_91 = arith.constant 0 : index
    %174 = vector.load %arg7[%c0_90, %c0_91] : memref<8x1xf32, #tpu.memory_space<vmem>>, vector<8x1xf32>
    %175 = vector.broadcast %174 : vector<8x1xf32> to vector<8x512xf32>
    %176 = arith.mulf %173, %175 : vector<8x512xf32>
    %c0_92 = arith.constant 0 : index
    %c0_93 = arith.constant 0 : index
    %177 = vector.load %arg8[%c0_92, %c0_93] : memref<8x1xf32, #tpu.memory_space<vmem>>, vector<8x1xf32>
    %178 = vector.broadcast %177 : vector<8x1xf32> to vector<8x512xf32>
    %179 = arith.addf %176, %178 : vector<8x512xf32>
    %180 = arith.addf %179, %24 : vector<8x512xf32>
    %cst_94 = arith.constant 0.000000e+00 : f32
    %181 = vector.broadcast %cst_94 : f32 to vector<8x512xf32>
    %182 = arith.cmpf oge, %180, %181 : vector<8x512xf32>
    %cst_95 = arith.constant 0.00999999977 : f32
    %183 = vector.broadcast %cst_95 : f32 to vector<8x512xf32>
    %184 = arith.mulf %183, %180 : vector<8x512xf32>
    %185 = arith.select %182, %180, %184 : vector<8x512xi1>, vector<8x512xf32>
    %c0_96 = arith.constant 0 : index
    %c0_97 = arith.constant 0 : index
    %186 = vector.load %arg9[%c0_96, %c0_97] : memref<8x512xf32, #tpu.memory_space<vmem>>, vector<8x512xf32>
    tpu.vector_store %arg9[%c0_96, %c0_97], %185 {strides = array<i32>} : memref<8x512xf32, #tpu.memory_space<vmem>>, vector<8x512xf32>,
    return
  }
}

</mosaic_0001>

<llo_original>
// kernel: residual_block.1
$region0: #{residual_block.1}
  #allocation0 [shape = 'u32[]', space=smem, size = 0x4, offset = 0x4, fixed_abs, tag = 'smem constant byte address 0x4 - core index']
  #allocation1 [shape = 'u32[144,128]{1,0:T(1,128)}', space=vmem, size = 0x12000, scoped, tag = 'internal scratch']
  #allocation2 [shape = 'f32[72,512]{1,0:T(8,128)}', space=vmem, size = 0x24000, scoped, tag = 'scratch operand']
  %s0 = inlined_call_operand.vmem [shape: f32[8,512], index: 0, kind: input, shape index: {}]
  %s1 = inlined_call_operand.vmem [shape: f32[8,72], index: 1, kind: input, shape index: {}]
  %s2 = inlined_call_operand.vmem [shape: f32[8,1], index: 2, kind: input, shape index: {}]
  %s3 = inlined_call_operand.vmem [shape: f32[8,1], index: 3, kind: input, shape index: {}]
  %s4 = inlined_call_operand.vmem [shape: f32[8,1], index: 4, kind: input, shape index: {}]
  %s5 = inlined_call_operand.vmem [shape: f32[8,72], index: 5, kind: input, shape index: {}]
  %s6 = inlined_call_operand.vmem [shape: f32[8,1], index: 6, kind: input, shape index: {}]
  %s7 = inlined_call_operand.vmem [shape: f32[8,1], index: 7, kind: input, shape index: {}]
  %s8 = inlined_call_operand.vmem [shape: f32[8,1], index: 8, kind: input, shape index: {}]
  %s9 = inlined_call_operand.vmem [shape: f32[8,512], index: 9, kind: output, shape index: {}]
  %s10 = sld [smem:[#allocation0]]
  $region46: #{residual_block.1} parent=0
    _
  %s12 = ssub.s32 1, %s10
  %s13 = scalar_select 0, %s12, %s10
  // Predicated region
  $region2: #{residual_block.1} parent=0 // pred_check
    _
  $region3: #{residual_block.1} parent=0 // pred_check_branch
    %15 = sbr.rel (0) target = $region5
  $region4: #{residual_block.1} parent=0 // pred_region
    _
  $region5: #{residual_block.1} parent=0 // pred_fallthru
    _
  // Predicated region
  $region6: #{residual_block.1} parent=0 // pred_check
    _
  $region7: #{residual_block.1} parent=0 // pred_check_branch
    %17 = sbr.rel (0) target = $region9
  $region8: #{residual_block.1} parent=0 // pred_region
    _
  $region9: #{residual_block.1} parent=0 // pred_fallthru
    _
  // Predicated region
  $region10: #{residual_block.1} parent=0 // pred_check
    _
  $region11: #{residual_block.1} parent=0 // pred_check_branch
    %19 = sbr.rel (0) target = $region13
  $region12: #{residual_block.1} parent=0 // pred_region
    _
  $region13: #{residual_block.1} parent=0 // pred_fallthru
    _
  // Predicated region
  $region14: #{residual_block.1} parent=0 // pred_check
    _
  $region15: #{residual_block.1} parent=0 // pred_check_branch
    %21 = sbr.rel (0) target = $region17
  $region16: #{residual_block.1} parent=0 // pred_region
    _
  $region17: #{residual_block.1} parent=0 // pred_fallthru
    _
  // Predicated region
  $region18: #{residual_block.1} parent=0 // pred_check
    _
  $region19: #{residual_block.1} parent=0 // pred_check_branch
    %23 = sbr.rel (0) target = $region21
  $region20: #{residual_block.1} parent=0 // pred_region
    _
  $region21: #{residual_block.1} parent=0 // pred_fallthru
    _
  // Predicated region
  $region22: #{residual_block.1} parent=0 // pred_check
    _
  $region23: #{residual_block.1} parent=0 // pred_check_branch
    %25 = sbr.rel (0) target = $region25
  $region24: #{residual_block.1} parent=0 // pred_region
    _
  $region25: #{residual_block.1} parent=0 // pred_fallthru
    _
  // Predicated region
  $region26: #{residual_block.1} parent=0 // pred_check
    _
  $region27: #{residual_block.1} parent=0 // pred_check_branch
    %27 = sbr.rel (0) target = $region29
  $region28: #{residual_block.1} parent=0 // pred_region
    _
  $region29: #{residual_block.1} parent=0 // pred_fallthru
    _
  // Predicated region
  $region30: #{residual_block.1} parent=0 // pred_check
    _
  $region31: #{residual_block.1} parent=0 // pred_check_branch
    %29 = sbr.rel (0) target = $region33
  $region32: #{residual_block.1} parent=0 // pred_region
    _
  $region33: #{residual_block.1} parent=0 // pred_fallthru
    _
  // Predicated region
  $region34: #{residual_block.1} parent=0 // pred_check
    _
  $region35: #{residual_block.1} parent=0 // pred_check_branch
    %31 = sbr.rel (0) target = $region37
  $region36: #{residual_block.1} parent=0 // pred_region
    _
  $region37: #{residual_block.1} parent=0 // pred_fallthru
    _
  %v32 = vlaneseq
  %v33 = vand.u32 %v32, 127
  %v34 = vadd.s32 %v33, 128
  %v35 = vadd.s32 %v33, 256
  %v36 = vadd.s32 %v33, 384
  %v37 = vand.u32 %v33, 15
  %v38 = vand.u32 %v34, 15
  %v39 = vand.u32 %v35, 15
  %v40 = vand.u32 %v36, 15
  %v41 = vshra.s32 %v33, 4
  %v42 = vshra.s32 %v34, 4
  %v43 = vshra.s32 %v35, 4
  %v44 = vshra.s32 %v36, 4
  %v45 = vand.u32 %v41, 15
  %v46 = vand.u32 %v42, 15
  %v47 = vand.u32 %v43, 15
  %v48 = vand.u32 %v44, 15
  %vm49 = vcmp.le.s32.totalorder %v45, 14
  %vm50 = vcmp.le.s32.totalorder %v46, 14
  %vm51 = vcmp.le.s32.totalorder %v47, 14
  %vm52 = vcmp.le.s32.totalorder %v48, 14
  %vm53 = vcmp.ge.s32.totalorder %v45, 1
  %vm54 = vcmp.ge.s32.totalorder %v46, 1
  %vm55 = vcmp.ge.s32.totalorder %v47, 1
  %vm56 = vcmp.ge.s32.totalorder %v48, 1
  %vm57 = vcmp.le.s32.totalorder %v37, 14
  %vm58 = vcmp.le.s32.totalorder %v38, 14
  %vm59 = vcmp.le.s32.totalorder %v39, 14
  %vm60 = vcmp.le.s32.totalorder %v40, 14
  %vm61 = vcmp.ge.s32.totalorder %v37, 1
  %vm62 = vcmp.ge.s32.totalorder %v38, 1
  %vm63 = vcmp.ge.s32.totalorder %v39, 1
  %vm64 = vcmp.ge.s32.totalorder %v40, 1
  %v65 = vcvt.s32.f32 %v33
  %v66 = vcvt.s32.f32 %v34
  %v67 = vcvt.s32.f32 %v35
  %v68 = vcvt.s32.f32 %v36
  %69 = vrot.lane.b32.xlu0 %v65, 1
  %v70 = vpop.permute.xlu0 %69
  %71 = vrot.lane.b32.xlu0 %v66, 1
  %v72 = vpop.permute.xlu0 %71
  %73 = vrot.lane.b32.xlu0 %v67, 1
  %v74 = vpop.permute.xlu0 %73
  %75 = vrot.lane.b32.xlu0 %v68, 1
  %v76 = vpop.permute.xlu0 %75
  %vm77 = vcmp.lt.s32.totalorder %v33, 1
  %v78 = vsel %vm77, %v74, %v76
  %v79 = vsel %vm77, %v72, %v74
  %v80 = vsel %vm77, %v70, %v72
  %v81 = vsel %vm77, %v76, %v70
  %vm82 = vcmp.eq.s32.totalorder %v33, 0
  %vm83 = vcmp.eq.s32.totalorder %v34, 0
  %vm84 = vcmp.eq.s32.totalorder %v35, 0
  %vm85 = vcmp.eq.s32.totalorder %v36, 0
  %v86 = vsub.f32 %v65, 1.0
  %v87 = vsub.f32 %v66, 1.0
  %v88 = vsub.f32 %v67, 1.0
  %v89 = vsub.f32 %v68, 1.0
  %v90 = vsel %vm82, 511.0, %v86
  %v91 = vsel %vm83, 511.0, %v87
  %v92 = vsel %vm84, 511.0, %v88
  %v93 = vsel %vm85, 511.0, %v89
  %vm94 = vcmp.eq.f32.partialorder %v81, %v90
  %vm95 = vcmp.eq.f32.partialorder %v80, %v91
  %vm96 = vcmp.eq.f32.partialorder %v79, %v92
  %vm97 = vcmp.eq.f32.partialorder %v78, %v93
  %v98 = vld [vmem:[%s0] sm:$0xff]
  %v99 = vld [vmem:[%s0 + $0x8] sm:$0xff]
  %v100 = vld [vmem:[%s0 + $0x10] sm:$0xff]
  %v101 = vld [vmem:[%s0 + $0x18] sm:$0xff]
  %102 = vrot.lane.b32.xlu0 %v98, 1
  %v103 = vpop.permute.xlu0 %102
  %104 = vrot.lane.b32.xlu0 %v99, 1
  %v105 = vpop.permute.xlu0 %104
  %106 = vrot.lane.b32.xlu0 %v100, 1
  %v107 = vpop.permute.xlu0 %106
  %108 = vrot.lane.b32.xlu0 %v101, 1
  %v109 = vpop.permute.xlu0 %108
  %v110 = vsel %vm77, %v107, %v109
  %v111 = vsel %vm77, %v105, %v107
  %v112 = vsel %vm77, %v103, %v105
  %v113 = vsel %vm77, %v109, %v103
  %114 = vrot.lane.b32.xlu0 %v98, 15
  %v115 = vpop.permute.xlu0 %114
  %116 = vrot.lane.b32.xlu0 %v99, 15
  %v117 = vpop.permute.xlu0 %116
  %118 = vrot.lane.b32.xlu0 %v100, 15
  %v119 = vpop.permute.xlu0 %118
  %120 = vrot.lane.b32.xlu0 %v101, 15
  %v121 = vpop.permute.xlu0 %120
  %vm122 = vcmp.lt.s32.totalorder %v33, 15
  %v123 = vsel %vm122, %v119, %v121
  %v124 = vsel %vm122, %v117, %v119
  %v125 = vsel %vm122, %v115, %v117
  %v126 = vsel %vm122, %v121, %v115
  %127 = vrot.lane.b32.xlu0 %v98, 16
  %v128 = vpop.permute.xlu0 %127
  %129 = vrot.lane.b32.xlu0 %v99, 16
  %v130 = vpop.permute.xlu0 %129
  %131 = vrot.lane.b32.xlu0 %v100, 16
  %v132 = vpop.permute.xlu0 %131
  %133 = vrot.lane.b32.xlu0 %v101, 16
  %v134 = vpop.permute.xlu0 %133
  %vm135 = vcmp.lt.s32.totalorder %v33, 16
  %v136 = vsel %vm135, %v132, %v134
  %v137 = vsel %vm135, %v130, %v132
  %v138 = vsel %vm135, %v128, %v130
  %v139 = vsel %vm135, %v134, %v128
  %140 = vrot.lane.b32.xlu0 %v98, 17
  %v141 = vpop.permute.xlu0 %140
  %142 = vrot.lane.b32.xlu0 %v99, 17
  %v143 = vpop.permute.xlu0 %142
  %144 = vrot.lane.b32.xlu0 %v100, 17
  %v145 = vpop.permute.xlu0 %144
  %146 = vrot.lane.b32.xlu0 %v101, 17
  %v147 = vpop.permute.xlu0 %146
  %vm148 = vcmp.lt.s32.totalorder %v33, 17
  %v149 = vsel %vm148, %v145, %v147
  %v150 = vsel %vm148, %v143, %v145
  %v151 = vsel %vm148, %v141, %v143
  %v152 = vsel %vm148, %v147, %v141
  %153 = vrot.lane.b32.xlu0 %v98, 111
  %v154 = vpop.permute.xlu0 %153
  %155 = vrot.lane.b32.xlu0 %v99, 111
  %v156 = vpop.permute.xlu0 %155
  %157 = vrot.lane.b32.xlu0 %v100, 111
  %v158 = vpop.permute.xlu0 %157
  %159 = vrot.lane.b32.xlu0 %v101, 111
  %v160 = vpop.permute.xlu0 %159
  %vm161 = vcmp.lt.s32.totalorder %v33, 111
  %v162 = vsel %vm161, %v158, %v160
  %v163 = vsel %vm161, %v156, %v158
  %v164 = vsel %vm161, %v154, %v156
  %v165 = vsel %vm161, %v160, %v154
  %166 = vrot.lane.b32.xlu0 %v98, 112
  %v167 = vpop.permute.xlu0 %166
  %168 = vrot.lane.b32.xlu0 %v99, 112
  %v169 = vpop.permute.xlu0 %168
  %170 = vrot.lane.b32.xlu0 %v100, 112
  %v171 = vpop.permute.xlu0 %170
  %172 = vrot.lane.b32.xlu0 %v101, 112
  %v173 = vpop.permute.xlu0 %172
  %vm174 = vcmp.lt.s32.totalorder %v33, 112
  %v175 = vsel %vm174, %v171, %v173
  %v176 = vsel %vm174, %v169, %v171
  %v177 = vsel %vm174, %v167, %v169
  %v178 = vsel %vm174, %v173, %v167
  %179 = vrot.lane.b32.xlu0 %v98, 113
  %v180 = vpop.permute.xlu0 %179
  %181 = vrot.lane.b32.xlu0 %v99, 113
  %v182 = vpop.permute.xlu0 %181
  %183 = vrot.lane.b32.xlu0 %v100, 113
  %v184 = vpop.permute.xlu0 %183
  %185 = vrot.lane.b32.xlu0 %v101, 113
  %v186 = vpop.permute.xlu0 %185
  %vm187 = vcmp.lt.s32.totalorder %v33, 113
  %v188 = vsel %vm187, %v184, %v186
  %v189 = vsel %vm187, %v182, %v184
  %v190 = vsel %vm187, %v180, %v182
  %v191 = vsel %vm187, %v186, %v180
  %192 = vrot.lane.b32.xlu0 %v98, 127
  %v193 = vpop.permute.xlu0 %192
  %194 = vrot.lane.b32.xlu0 %v99, 127
  %v195 = vpop.permute.xlu0 %194
  %196 = vrot.lane.b32.xlu0 %v100, 127
  %v197 = vpop.permute.xlu0 %196
  %198 = vrot.lane.b32.xlu0 %v101, 127
  %v199 = vpop.permute.xlu0 %198
  %vm200 = vcmp.lt.s32.totalorder %v33, 127
  %v201 = vsel %vm200, %v197, %v199
  %v202 = vsel %vm200, %v195, %v197
  %v203 = vsel %vm200, %v193, %v195
  %v204 = vsel %vm200, %v199, %v193
  %v205 = vsel %vm94, %v152, %v164
  %v206 = vsel %vm95, %v151, %v163
  %v207 = vsel %vm96, %v150, %v162
  %v208 = vsel %vm97, %v149, %v165
  %vm209 = vmand %vm53, %vm61
  %vm210 = vmand %vm54, %vm62
  %vm211 = vmand %vm55, %vm63
  %vm212 = vmand %vm56, %vm64
  %v213 = vsel %vm209, %v205, 0.0
  %v214 = vsel %vm210, %v206, 0.0
  %v215 = vsel %vm211, %v207, 0.0
  %v216 = vsel %vm212, %v208, 0.0
  %217 = vst [vmem:[#allocation2] sm:$0xff] %v213
  %218 = vst [vmem:[#allocation2 + $0x8] sm:$0xff] %v214
  %219 = vst [vmem:[#allocation2 + $0x10] sm:$0xff] %v215
  %220 = vst [vmem:[#allocation2 + $0x18] sm:$0xff] %v216
  %v221 = vsel %vm94, %v139, %v177
  %v222 = vsel %vm95, %v138, %v176
  %v223 = vsel %vm96, %v137, %v175
  %v224 = vsel %vm97, %v136, %v178
  %v225 = vsel %vm53, %v221, 0.0
  %v226 = vsel %vm54, %v222, 0.0
  %v227 = vsel %vm55, %v223, 0.0
  %v228 = vsel %vm56, %v224, 0.0
  %229 = vst [vmem:[#allocation2 + $0x20] sm:$0xff] %v225
  %230 = vst [vmem:[#allocation2 + $0x28] sm:$0xff] %v226
  %231 = vst [vmem:[#allocation2 + $0x30] sm:$0xff] %v227
  %232 = vst [vmem:[#allocation2 + $0x38] sm:$0xff] %v228
  %v233 = vsel %vm94, %v126, %v190
  %v234 = vsel %vm95, %v125, %v189
  %v235 = vsel %vm96, %v124, %v188
  %v236 = vsel %vm97, %v123, %v191
  %vm237 = vmand %vm53, %vm57
  %vm238 = vmand %vm54, %vm58
  %vm239 = vmand %vm55, %vm59
  %vm240 = vmand %vm56, %vm60
  %v241 = vsel %vm237, %v233, 0.0
  %v242 = vsel %vm238, %v234, 0.0
  %v243 = vsel %vm239, %v235, 0.0
  %v244 = vsel %vm240, %v236, 0.0
  %245 = vst [vmem:[#allocation2 + $0x40] sm:$0xff] %v241
  %246 = vst [vmem:[#allocation2 + $0x48] sm:$0xff] %v242
  %247 = vst [vmem:[#allocation2 + $0x50] sm:$0xff] %v243
  %248 = vst [vmem:[#allocation2 + $0x58] sm:$0xff] %v244
  %v249 = vsel %vm94, %v113, %v203
  %v250 = vsel %vm95, %v112, %v202
  %v251 = vsel %vm96, %v111, %v201
  %v252 = vsel %vm97, %v110, %v204
  %v253 = vsel %vm61, %v249, 0.0
  %v254 = vsel %vm62, %v250, 0.0
  %v255 = vsel %vm63, %v251, 0.0
  %v256 = vsel %vm64, %v252, 0.0
  %257 = vst [vmem:[#allocation2 + $0x60] sm:$0xff] %v253
  %258 = vst [vmem:[#allocation2 + $0x68] sm:$0xff] %v254
  %259 = vst [vmem:[#allocation2 + $0x70] sm:$0xff] %v255
  %260 = vst [vmem:[#allocation2 + $0x78] sm:$0xff] %v256
  %261 = vst [vmem:[#allocation2 + $0x80] sm:$0xff] %v98
  %262 = vst [vmem:[#allocation2 + $0x88] sm:$0xff] %v99
  %263 = vst [vmem:[#allocation2 + $0x90] sm:$0xff] %v100
  %264 = vst [vmem:[#allocation2 + $0x98] sm:$0xff] %v101
  %v265 = vsel %vm94, %v203, %v113
  %v266 = vsel %vm95, %v202, %v112
  %v267 = vsel %vm96, %v201, %v111
  %v268 = vsel %vm97, %v204, %v110
  %v269 = vsel %vm57, %v265, 0.0
  %v270 = vsel %vm58, %v266, 0.0
  %v271 = vsel %vm59, %v267, 0.0
  %v272 = vsel %vm60, %v268, 0.0
  %273 = vst [vmem:[#allocation2 + $0xa0] sm:$0xff] %v269
  %274 = vst [vmem:[#allocation2 + $0xa8] sm:$0xff] %v270
  %275 = vst [vmem:[#allocation2 + $0xb0] sm:$0xff] %v271
  %276 = vst [vmem:[#allocation2 + $0xb8] sm:$0xff] %v272
  %v277 = vsel %vm94, %v190, %v126
  %v278 = vsel %vm95, %v189, %v125
  %v279 = vsel %vm96, %v188, %v124
  %v280 = vsel %vm97, %v191, %v123
  %vm281 = vmand %vm49, %vm61
  %vm282 = vmand %vm50, %vm62
  %vm283 = vmand %vm51, %vm63
  %vm284 = vmand %vm52, %vm64
  %v285 = vsel %vm281, %v277, 0.0
  %v286 = vsel %vm282, %v278, 0.0
  %v287 = vsel %vm283, %v279, 0.0
  %v288 = vsel %vm284, %v280, 0.0
  %289 = vst [vmem:[#allocation2 + $0xc0] sm:$0xff] %v285
  %290 = vst [vmem:[#allocation2 + $0xc8] sm:$0xff] %v286
  %291 = vst [vmem:[#allocation2 + $0xd0] sm:$0xff] %v287
  %292 = vst [vmem:[#allocation2 + $0xd8] sm:$0xff] %v288
  %v293 = vsel %vm94, %v177, %v139
  %v294 = vsel %vm95, %v176, %v138
  %v295 = vsel %vm96, %v175, %v137
  %v296 = vsel %vm97, %v178, %v136
  %v297 = vsel %vm49, %v293, 0.0
  %v298 = vsel %vm50, %v294, 0.0
  %v299 = vsel %vm51, %v295, 0.0
  %v300 = vsel %vm52, %v296, 0.0
  %301 = vst [vmem:[#allocation2 + $0xe0] sm:$0xff] %v297
  %302 = vst [vmem:[#allocation2 + $0xe8] sm:$0xff] %v298
  %303 = vst [vmem:[#allocation2 + $0xf0] sm:$0xff] %v299
  %304 = vst [vmem:[#allocation2 + $0xf8] sm:$0xff] %v300
  %v305 = vsel %vm94, %v164, %v152
  %v306 = vsel %vm95, %v163, %v151
  %v307 = vsel %vm96, %v162, %v150
  %v308 = vsel %vm97, %v165, %v149
  %vm309 = vmand %vm49, %vm57
  %vm310 = vmand %vm50, %vm58
  %vm311 = vmand %vm51, %vm59
  %vm312 = vmand %vm52, %vm60
  %v313 = vsel %vm309, %v305, 0.0
  %v314 = vsel %vm310, %v306, 0.0
  %v315 = vsel %vm311, %v307, 0.0
  %v316 = vsel %vm312, %v308, 0.0
  %317 = vst [vmem:[#allocation2 + $0x100] sm:$0xff] %v313
  %318 = vst [vmem:[#allocation2 + $0x108] sm:$0xff] %v314
  %319 = vst [vmem:[#allocation2 + $0x110] sm:$0xff] %v315
  %320 = vst [vmem:[#allocation2 + $0x118] sm:$0xff] %v316
  %v321 = vld [vmem:[%s1] sm:$0xff]
  %v322 = vld [vmem:[#allocation2] sm:$0xff]
  %v323 = vld [vmem:[#allocation2 + $0x8] sm:$0xff]
  %v324 = vld [vmem:[#allocation2 + $0x10] sm:$0xff]
  %v325 = vld [vmem:[#allocation2 + $0x18] sm:$0xff]
  %v326 = vld [vmem:[#allocation2 + $0x20] sm:$0xff]
  %v327 = vld [vmem:[#allocation2 + $0x28] sm:$0xff]
  %v328 = vld [vmem:[#allocation2 + $0x30] sm:$0xff]
  %v329 = vld [vmem:[#allocation2 + $0x38] sm:$0xff]
  %v330 = vld [vmem:[#allocation2 + $0x40] sm:$0xff]
  %v331 = vld [vmem:[#allocation2 + $0x48] sm:$0xff]
  %v332 = vld [vmem:[#allocation2 + $0x50] sm:$0xff]
  %v333 = vld [vmem:[#allocation2 + $0x58] sm:$0xff]
  %v334 = vld [vmem:[#allocation2 + $0x60] sm:$0xff]
  %v335 = vld [vmem:[#allocation2 + $0x68] sm:$0xff]
  %v336 = vld [vmem:[#allocation2 + $0x70] sm:$0xff]
  %v337 = vld [vmem:[#allocation2 + $0x78] sm:$0xff]
  %v338 = vld [vmem:[#allocation2 + $0x80] sm:$0xff]
  %v339 = vld [vmem:[#allocation2 + $0x88] sm:$0xff]
  %v340 = vld [vmem:[#allocation2 + $0x90] sm:$0xff]
  %v341 = vld [vmem:[#allocation2 + $0x98] sm:$0xff]
  %v342 = vld [vmem:[#allocation2 + $0xa0] sm:$0xff]
  %v343 = vld [vmem:[#allocation2 + $0xa8] sm:$0xff]
  %v344 = vld [vmem:[#allocation2 + $0xb0] sm:$0xff]
  %v345 = vld [vmem:[#allocation2 + $0xb8] sm:$0xff]
  %v346 = vld [vmem:[#allocation2 + $0xc0] sm:$0xff]
  %v347 = vld [vmem:[#allocation2 + $0xc8] sm:$0xff]
  %v348 = vld [vmem:[#allocation2 + $0xd0] sm:$0xff]
  %v349 = vld [vmem:[#allocation2 + $0xd8] sm:$0xff]
  %v350 = vld [vmem:[#allocation2 + $0xe0] sm:$0xff]
  %v351 = vld [vmem:[#allocation2 + $0xe8] sm:$0xff]
  %v352 = vld [vmem:[#allocation2 + $0xf0] sm:$0xff]
  %v353 = vld [vmem:[#allocation2 + $0xf8] sm:$0xff]
  %v354 = vld [vmem:[#allocation2 + $0x100] sm:$0xff]
  %v355 = vld [vmem:[#allocation2 + $0x108] sm:$0xff]
  %v356 = vld [vmem:[#allocation2 + $0x110] sm:$0xff]
  %v357 = vld [vmem:[#allocation2 + $0x118] sm:$0xff]
  %v358 = vld [vmem:[%s2] sm:$0xff]
  %360 = vset.pattern.permute.xlu0 0
  %361 = vperm.xlu0 %360, %v358
  %v362 = vpop.permute.xlu0 %361
  %vm364 = vcmask 588800
  %v366 = vsel %vm364, %v321, 0
  %368 = vmatprep.subr.mxu0 %v323
  %369 = vmatpush1.msra.mxu0 %v322
  %370 = vmatprep.subr.mxu0 %v327
  %371 = vmatpush1.msra.mxu0 %v326
  %372 = vmatprep.subr.mxu0 %v331
  %373 = vmatpush1.msra.mxu0 %v330
  %374 = vmatprep.subr.mxu0 %v335
  %375 = vmatpush1.msra.mxu0 %v334
  %376 = vmatprep.subr.mxu0 %v339
  %377 = vmatpush1.msra.mxu0 %v338
  %378 = vmatprep.subr.mxu0 %v343
  %379 = vmatpush1.msra.mxu0 %v342
  %380 = vmatprep.subr.mxu0 %v347
  %381 = vmatpush1.msra.mxu0 %v346
  %382 = vmatprep.subr.mxu0 %v351
  %383 = vmatpush1.msra.mxu0 %v350
  %384 = vmatprep.subr.mxu0 %v355
  %385 = vmatpush1.msra.mxu0 %v354
  %386 = vmatprep.subr.mxu0 0.0
  %387 = vmatpush1.msra.mxu0 0.0
  %388 = vmatprep.subr.mxu0 0.0
  %389 = vmatpush1.msra.mxu0 0.0
  %390 = vmatprep.subr.mxu0 0.0
  %391 = vmatpush1.msra.mxu0 0.0
  %392 = vmatprep.subr.mxu0 0.0
  %393 = vmatpush1.msra.mxu0 0.0
  %394 = vmatprep.subr.mxu0 0.0
  %395 = vmatpush1.msra.mxu0 0.0
  %396 = vmatprep.subr.mxu0 0.0
  %397 = vmatpush1.msra.mxu0 0.0
  %398 = vmatprep.subr.mxu0 0.0
  %399 = vmatpush1.msra.mxu0 0.0
  %400 = vmatprep.subr.mxu0 0.0
  %401 = vmatpush1.msra.mxu0 0.0
  %402 = vmatprep.subr.mxu0 0.0
  %403 = vmatpush1.msra.mxu0 0.0
  %404 = vmatprep.subr.mxu0 0.0
  %405 = vmatpush1.msra.mxu0 0.0
  %406 = vmatprep.subr.mxu0 0.0
  %407 = vmatpush1.msra.mxu0 0.0
  %408 = vmatprep.subr.mxu0 0.0
  %409 = vmatpush1.msra.mxu0 0.0
  %410 = vmatprep.subr.mxu0 0.0
  %411 = vmatpush1.msra.mxu0 0.0
  %412 = vmatprep.subr.mxu0 0.0
  %413 = vmatpush1.msra.mxu0 0.0
  %414 = vmatprep.subr.mxu0 0.0
  %415 = vmatpush1.msra.mxu0 0.0
  %416 = vmatprep.subr.mxu0 0.0
  %417 = vmatpush1.msra.mxu0 0.0
  %418 = vmatprep.subr.mxu0 0.0
  %419 = vmatpush1.msra.mxu0 0.0
  %420 = vmatprep.subr.mxu0 0.0
  %421 = vmatpush1.msra.mxu0 0.0
  %422 = vmatprep.subr.mxu0 0.0
  %423 = vmatpush1.msra.mxu0 0.0
  %424 = vmatprep.subr.mxu0 0.0
  %425 = vmatpush1.msra.mxu0 0.0
  %426 = vmatprep.subr.mxu0 0.0
  %427 = vmatpush1.msra.mxu0 0.0
  %428 = vmatprep.subr.mxu0 0.0
  %429 = vmatpush1.msra.mxu0 0.0
  %430 = vmatprep.subr.mxu0 0.0
  %431 = vmatpush1.msra.mxu0 0.0
  %432 = vmatprep.mubr.f32.mxu0 0.0
  %433 = vmatmul.mubr.f32.gmra.mrb[0].mxu0 %v366
  %v434 = vpop.f32.mrb[0].mxu0
  %v435 = vadd.f32 %v362, %v434
  %v436 = vpop.f32.mrb[0].mxu0
  %v437 = vadd.f32 %v362, %v436
  %438 = vdwg.mxu0
  %439 = vmatprep.subr.mxu0 %v325
  %440 = vmatpush1.msra.mxu0 %v324
  %441 = vmatprep.subr.mxu0 %v329
  %442 = vmatpush1.msra.mxu0 %v328
  %443 = vmatprep.subr.mxu0 %v333
  %444 = vmatpush1.msra.mxu0 %v332
  %445 = vmatprep.subr.mxu0 %v337
  %446 = vmatpush1.msra.mxu0 %v336
  %447 = vmatprep.subr.mxu0 %v341
  %448 = vmatpush1.msra.mxu0 %v340
  %449 = vmatprep.subr.mxu0 %v345
  %450 = vmatpush1.msra.mxu0 %v344
  %451 = vmatprep.subr.mxu0 %v349
  %452 = vmatpush1.msra.mxu0 %v348
  %453 = vmatprep.subr.mxu0 %v353
  %454 = vmatpush1.msra.mxu0 %v352
  %455 = vmatprep.subr.mxu0 %v357
  %456 = vmatpush1.msra.mxu0 %v356
  %457 = vmatprep.subr.mxu0 0.0
  %458 = vmatpush1.msra.mxu0 0.0
  %459 = vmatprep.subr.mxu0 0.0
  %460 = vmatpush1.msra.mxu0 0.0
  %461 = vmatprep.subr.mxu0 0.0
  %462 = vmatpush1.msra.mxu0 0.0
  %463 = vmatprep.subr.mxu0 0.0
  %464 = vmatpush1.msra.mxu0 0.0
  %465 = vmatprep.subr.mxu0 0.0
  %466 = vmatpush1.msra.mxu0 0.0
  %467 = vmatprep.subr.mxu0 0.0
  %468 = vmatpush1.msra.mxu0 0.0
  %469 = vmatprep.subr.mxu0 0.0
  %470 = vmatpush1.msra.mxu0 0.0
  %471 = vmatprep.subr.mxu0 0.0
  %472 = vmatpush1.msra.mxu0 0.0
  %473 = vmatprep.subr.mxu0 0.0
  %474 = vmatpush1.msra.mxu0 0.0
  %475 = vmatprep.subr.mxu0 0.0
  %476 = vmatpush1.msra.mxu0 0.0
  %477 = vmatprep.subr.mxu0 0.0
  %478 = vmatpush1.msra.mxu0 0.0
  %479 = vmatprep.subr.mxu0 0.0
  %480 = vmatpush1.msra.mxu0 0.0
  %481 = vmatprep.subr.mxu0 0.0
  %482 = vmatpush1.msra.mxu0 0.0
  %483 = vmatprep.subr.mxu0 0.0
  %484 = vmatpush1.msra.mxu0 0.0
  %485 = vmatprep.subr.mxu0 0.0
  %486 = vmatpush1.msra.mxu0 0.0
  %487 = vmatprep.subr.mxu0 0.0
  %488 = vmatpush1.msra.mxu0 0.0
  %489 = vmatprep.subr.mxu0 0.0
  %490 = vmatpush1.msra.mxu0 0.0
  %491 = vmatprep.subr.mxu0 0.0
  %492 = vmatpush1.msra.mxu0 0.0
  %493 = vmatprep.subr.mxu0 0.0
  %494 = vmatpush1.msra.mxu0 0.0
  %495 = vmatprep.subr.mxu0 0.0
  %496 = vmatpush1.msra.mxu0 0.0
  %497 = vmatprep.subr.mxu0 0.0
  %498 = vmatpush1.msra.mxu0 0.0
  %499 = vmatprep.subr.mxu0 0.0
  %500 = vmatpush1.msra.mxu0 0.0
  %501 = vmatprep.subr.mxu0 0.0
  %502 = vmatpush1.msra.mxu0 0.0
  %503 = vmatprep.mubr.f32.mxu0 0.0
  %504 = vmatmul.mubr.f32.gmra.mrb[0].mxu0 %v366
  %v505 = vpop.f32.mrb[0].mxu0
  %v506 = vadd.f32 %v362, %v505
  %v507 = vpop.f32.mrb[0].mxu0
  %v508 = vadd.f32 %v362, %v507
  %509 = vdwg.mxu0
  %v510 = vadd.f32 %v435, %v437
  %v511 = vadd.f32 %v510, %v506
  %v512 = vadd.f32 %v511, %v508
  %513 = vadd.xlane.f32.xlu0 %v512
  %v514 = vpop.xlane.xlu0 %513
  %v515 = vmul.f32 %v514, 0.001953125
  %v516 = vmul.f32 %v435, %v435
  %v517 = vmul.f32 %v437, %v437
  %v518 = vmul.f32 %v506, %v506
  %v519 = vmul.f32 %v508, %v508
  %v520 = vadd.f32 %v516, %v517
  %v521 = vadd.f32 %v520, %v518
  %v522 = vadd.f32 %v521, %v519
  %523 = vadd.xlane.f32.xlu0 %v522
  %v524 = vpop.xlane.xlu0 %523
  %v525 = vmul.f32 %v524, 0.001953125
  %v526 = vmul.f32 %v515, %v515
  %v527 = vsub.f32 %v525, %v526
  %v528 = vsub.f32 %v435, %v515
  %v529 = vsub.f32 %v437, %v515
  %v530 = vsub.f32 %v506, %v515
  %v531 = vsub.f32 %v508, %v515
  %v532 = vadd.f32 %v527, 1e-05
  %v533 = vrsqrt.pop %v532
  %v534 = vmul.f32 %v528, %v533
  %v535 = vmul.f32 %v529, %v533
  %v536 = vmul.f32 %v530, %v533
  %v537 = vmul.f32 %v531, %v533
  %v538 = vld [vmem:[%s3] sm:$0xff]
  %540 = vset.pattern.permute.xlu0 0
  %541 = vperm.xlu0 %540, %v538
  %v542 = vpop.permute.xlu0 %541
  %v544 = vmul.f32 %v534, %v542
  %v545 = vmul.f32 %v535, %v542
  %v546 = vmul.f32 %v536, %v542
  %v547 = vmul.f32 %v537, %v542
  %v548 = vld [vmem:[%s4] sm:$0xff]
  %550 = vset.pattern.permute.xlu0 0
  %551 = vperm.xlu0 %550, %v548
  %v552 = vpop.permute.xlu0 %551
  %v554 = vadd.f32 %v544, %v552
  %v555 = vadd.f32 %v545, %v552
  %v556 = vadd.f32 %v546, %v552
  %v557 = vadd.f32 %v547, %v552
  %vm558 = vcmp.ge.f32.partialorder %v554, 0.0
  %vm559 = vcmp.ge.f32.partialorder %v555, 0.0
  %vm560 = vcmp.ge.f32.partialorder %v556, 0.0
  %vm561 = vcmp.ge.f32.partialorder %v557, 0.0
  %v562 = vmul.f32 %v554, 0.01
  %v563 = vmul.f32 %v555, 0.01
  %v564 = vmul.f32 %v556, 0.01
  %v565 = vmul.f32 %v557, 0.01
  %v566 = vsel %vm558, %v554, %v562
  %v567 = vsel %vm559, %v555, %v563
  %v568 = vsel %vm560, %v556, %v564
  %v569 = vsel %vm561, %v557, %v565
  %570 = vrot.lane.b32.xlu0 %v566, 1
  %v571 = vpop.permute.xlu0 %570
  %572 = vrot.lane.b32.xlu0 %v567, 1
  %v573 = vpop.permute.xlu0 %572
  %574 = vrot.lane.b32.xlu0 %v568, 1
  %v575 = vpop.permute.xlu0 %574
  %576 = vrot.lane.b32.xlu0 %v569, 1
  %v577 = vpop.permute.xlu0 %576
  %v578 = vsel %vm77, %v575, %v577
  %v579 = vsel %vm77, %v573, %v575
  %v580 = vsel %vm77, %v571, %v573
  %v581 = vsel %vm77, %v577, %v571
  %582 = vrot.lane.b32.xlu0 %v566, 15
  %v583 = vpop.permute.xlu0 %582
  %584 = vrot.lane.b32.xlu0 %v567, 15
  %v585 = vpop.permute.xlu0 %584
  %586 = vrot.lane.b32.xlu0 %v568, 15
  %v587 = vpop.permute.xlu0 %586
  %588 = vrot.lane.b32.xlu0 %v569, 15
  %v589 = vpop.permute.xlu0 %588
  %v590 = vsel %vm122, %v587, %v589
  %v591 = vsel %vm122, %v585, %v587
  %v592 = vsel %vm122, %v583, %v585
  %v593 = vsel %vm122, %v589, %v583
  %594 = vrot.lane.b32.xlu0 %v566, 16
  %v595 = vpop.permute.xlu0 %594
  %596 = vrot.lane.b32.xlu0 %v567, 16
  %v597 = vpop.permute.xlu0 %596
  %598 = vrot.lane.b32.xlu0 %v568, 16
  %v599 = vpop.permute.xlu0 %598
  %600 = vrot.lane.b32.xlu0 %v569, 16
  %v601 = vpop.permute.xlu0 %600
  %v602 = vsel %vm135, %v599, %v601
  %v603 = vsel %vm135, %v597, %v599
  %v604 = vsel %vm135, %v595, %v597
  %v605 = vsel %vm135, %v601, %v595
  %606 = vrot.lane.b32.xlu0 %v566, 17
  %v607 = vpop.permute.xlu0 %606
  %608 = vrot.lane.b32.xlu0 %v567, 17
  %v609 = vpop.permute.xlu0 %608
  %610 = vrot.lane.b32.xlu0 %v568, 17
  %v611 = vpop.permute.xlu0 %610
  %612 = vrot.lane.b32.xlu0 %v569, 17
  %v613 = vpop.permute.xlu0 %612
  %v614 = vsel %vm148, %v611, %v613
  %v615 = vsel %vm148, %v609, %v611
  %v616 = vsel %vm148, %v607, %v609
  %v617 = vsel %vm148, %v613, %v607
  %618 = vrot.lane.b32.xlu0 %v566, 111
  %v619 = vpop.permute.xlu0 %618
  %620 = vrot.lane.b32.xlu0 %v567, 111
  %v621 = vpop.permute.xlu0 %620
  %622 = vrot.lane.b32.xlu0 %v568, 111
  %v623 = vpop.permute.xlu0 %622
  %624 = vrot.lane.b32.xlu0 %v569, 111
  %v625 = vpop.permute.xlu0 %624
  %v626 = vsel %vm161, %v623, %v625
  %v627 = vsel %vm161, %v621, %v623
  %v628 = vsel %vm161, %v619, %v621
  %v629 = vsel %vm161, %v625, %v619
  %630 = vrot.lane.b32.xlu0 %v566, 112
  %v631 = vpop.permute.xlu0 %630
  %632 = vrot.lane.b32.xlu0 %v567, 112
  %v633 = vpop.permute.xlu0 %632
  %634 = vrot.lane.b32.xlu0 %v568, 112
  %v635 = vpop.permute.xlu0 %634
  %636 = vrot.lane.b32.xlu0 %v569, 112
  %v637 = vpop.permute.xlu0 %636
  %v638 = vsel %vm174, %v635, %v637
  %v639 = vsel %vm174, %v633, %v635
  %v640 = vsel %vm174, %v631, %v633
  %v641 = vsel %vm174, %v637, %v631
  %642 = vrot.lane.b32.xlu0 %v566, 113
  %v643 = vpop.permute.xlu0 %642
  %644 = vrot.lane.b32.xlu0 %v567, 113
  %v645 = vpop.permute.xlu0 %644
  %646 = vrot.lane.b32.xlu0 %v568, 113
  %v647 = vpop.permute.xlu0 %646
  %648 = vrot.lane.b32.xlu0 %v569, 113
  %v649 = vpop.permute.xlu0 %648
  %v650 = vsel %vm187, %v647, %v649
  %v651 = vsel %vm187, %v645, %v647
  %v652 = vsel %vm187, %v643, %v645
  %v653 = vsel %vm187, %v649, %v643
  %654 = vrot.lane.b32.xlu0 %v566, 127
  %v655 = vpop.permute.xlu0 %654
  %656 = vrot.lane.b32.xlu0 %v567, 127
  %v657 = vpop.permute.xlu0 %656
  %658 = vrot.lane.b32.xlu0 %v568, 127
  %v659 = vpop.permute.xlu0 %658
  %660 = vrot.lane.b32.xlu0 %v569, 127
  %v661 = vpop.permute.xlu0 %660
  %v662 = vsel %vm200, %v659, %v661
  %v663 = vsel %vm200, %v657, %v659
  %v664 = vsel %vm200, %v655, %v657
  %v665 = vsel %vm200, %v661, %v655
  %v666 = vsel %vm94, %v617, %v628
  %v667 = vsel %vm95, %v616, %v627
  %v668 = vsel %vm96, %v615, %v626
  %v669 = vsel %vm97, %v614, %v629
  %v670 = vsel %vm209, %v666, 0.0
  %v671 = vsel %vm210, %v667, 0.0
  %v672 = vsel %vm211, %v668, 0.0
  %v673 = vsel %vm212, %v669, 0.0
  %674 = vst [vmem:[#allocation2] sm:$0xff] %v670
  %675 = vst [vmem:[#allocation2 + $0x8] sm:$0xff] %v671
  %676 = vst [vmem:[#allocation2 + $0x10] sm:$0xff] %v672
  %677 = vst [vmem:[#allocation2 + $0x18] sm:$0xff] %v673
  %v678 = vsel %vm94, %v605, %v640
  %v679 = vsel %vm95, %v604, %v639
  %v680 = vsel %vm96, %v603, %v638
  %v681 = vsel %vm97, %v602, %v641
  %v682 = vsel %vm53, %v678, 0.0
  %v683 = vsel %vm54, %v679, 0.0
  %v684 = vsel %vm55, %v680, 0.0
  %v685 = vsel %vm56, %v681, 0.0
  %686 = vst [vmem:[#allocation2 + $0x20] sm:$0xff] %v682
  %687 = vst [vmem:[#allocation2 + $0x28] sm:$0xff] %v683
  %688 = vst [vmem:[#allocation2 + $0x30] sm:$0xff] %v684
  %689 = vst [vmem:[#allocation2 + $0x38] sm:$0xff] %v685
  %v690 = vsel %vm94, %v593, %v652
  %v691 = vsel %vm95, %v592, %v651
  %v692 = vsel %vm96, %v591, %v650
  %v693 = vsel %vm97, %v590, %v653
  %v694 = vsel %vm237, %v690, 0.0
  %v695 = vsel %vm238, %v691, 0.0
  %v696 = vsel %vm239, %v692, 0.0
  %v697 = vsel %vm240, %v693, 0.0
  %698 = vst [vmem:[#allocation2 + $0x40] sm:$0xff] %v694
  %699 = vst [vmem:[#allocation2 + $0x48] sm:$0xff] %v695
  %700 = vst [vmem:[#allocation2 + $0x50] sm:$0xff] %v696
  %701 = vst [vmem:[#allocation2 + $0x58] sm:$0xff] %v697
  %v702 = vsel %vm94, %v581, %v664
  %v703 = vsel %vm95, %v580, %v663
  %v704 = vsel %vm96, %v579, %v662
  %v705 = vsel %vm97, %v578, %v665
  %v706 = vsel %vm61, %v702, 0.0
  %v707 = vsel %vm62, %v703, 0.0
  %v708 = vsel %vm63, %v704, 0.0
  %v709 = vsel %vm64, %v705, 0.0
  %710 = vst [vmem:[#allocation2 + $0x60] sm:$0xff] %v706
  %711 = vst [vmem:[#allocation2 + $0x68] sm:$0xff] %v707
  %712 = vst [vmem:[#allocation2 + $0x70] sm:$0xff] %v708
  %713 = vst [vmem:[#allocation2 + $0x78] sm:$0xff] %v709
  %714 = vst [vmem:[#allocation2 + $0x80] sm:$0xff] %v566
  %715 = vst [vmem:[#allocation2 + $0x88] sm:$0xff] %v567
  %716 = vst [vmem:[#allocation2 + $0x90] sm:$0xff] %v568
  %717 = vst [vmem:[#allocation2 + $0x98] sm:$0xff] %v569
  %v718 = vsel %vm94, %v664, %v581
  %v719 = vsel %vm95, %v663, %v580
  %v720 = vsel %vm96, %v662, %v579
  %v721 = vsel %vm97, %v665, %v578
  %v722 = vsel %vm57, %v718, 0.0
  %v723 = vsel %vm58, %v719, 0.0
  %v724 = vsel %vm59, %v720, 0.0
  %v725 = vsel %vm60, %v721, 0.0
  %726 = vst [vmem:[#allocation2 + $0xa0] sm:$0xff] %v722
  %727 = vst [vmem:[#allocation2 + $0xa8] sm:$0xff] %v723
  %728 = vst [vmem:[#allocation2 + $0xb0] sm:$0xff] %v724
  %729 = vst [vmem:[#allocation2 + $0xb8] sm:$0xff] %v725
  %v730 = vsel %vm94, %v652, %v593
  %v731 = vsel %vm95, %v651, %v592
  %v732 = vsel %vm96, %v650, %v591
  %v733 = vsel %vm97, %v653, %v590
  %v734 = vsel %vm281, %v730, 0.0
  %v735 = vsel %vm282, %v731, 0.0
  %v736 = vsel %vm283, %v732, 0.0
  %v737 = vsel %vm284, %v733, 0.0
  %738 = vst [vmem:[#allocation2 + $0xc0] sm:$0xff] %v734
  %739 = vst [vmem:[#allocation2 + $0xc8] sm:$0xff] %v735
  %740 = vst [vmem:[#allocation2 + $0xd0] sm:$0xff] %v736
  %741 = vst [vmem:[#allocation2 + $0xd8] sm:$0xff] %v737
  %v742 = vsel %vm94, %v640, %v605
  %v743 = vsel %vm95, %v639, %v604
  %v744 = vsel %vm96, %v638, %v603
  %v745 = vsel %vm97, %v641, %v602
  %v746 = vsel %vm49, %v742, 0.0
  %v747 = vsel %vm50, %v743, 0.0
  %v748 = vsel %vm51, %v744, 0.0
  %v749 = vsel %vm52, %v745, 0.0
  %750 = vst [vmem:[#allocation2 + $0xe0] sm:$0xff] %v746
  %751 = vst [vmem:[#allocation2 + $0xe8] sm:$0xff] %v747
  %752 = vst [vmem:[#allocation2 + $0xf0] sm:$0xff] %v748
  %753 = vst [vmem:[#allocation2 + $0xf8] sm:$0xff] %v749
  %v754 = vsel %vm94, %v628, %v617
  %v755 = vsel %vm95, %v627, %v616
  %v756 = vsel %vm96, %v626, %v615
  %v757 = vsel %vm97, %v629, %v614
  %v758 = vsel %vm309, %v754, 0.0
  %v759 = vsel %vm310, %v755, 0.0
  %v760 = vsel %vm311, %v756, 0.0
  %v761 = vsel %vm312, %v757, 0.0
  %762 = vst [vmem:[#allocation2 + $0x100] sm:$0xff] %v758
  %763 = vst [vmem:[#allocation2 + $0x108] sm:$0xff] %v759
  %764 = vst [vmem:[#allocation2 + $0x110] sm:$0xff] %v760
  %765 = vst [vmem:[#allocation2 + $0x118] sm:$0xff] %v761
  %v766 = vld [vmem:[%s5] sm:$0xff]
  %v767 = vld [vmem:[#allocation2] sm:$0xff]
  %v768 = vld [vmem:[#allocation2 + $0x8] sm:$0xff]
  %v769 = vld [vmem:[#allocation2 + $0x10] sm:$0xff]
  %v770 = vld [vmem:[#allocation2 + $0x18] sm:$0xff]
  %v771 = vld [vmem:[#allocation2 + $0x20] sm:$0xff]
  %v772 = vld [vmem:[#allocation2 + $0x28] sm:$0xff]
  %v773 = vld [vmem:[#allocation2 + $0x30] sm:$0xff]
  %v774 = vld [vmem:[#allocation2 + $0x38] sm:$0xff]
  %v775 = vld [vmem:[#allocation2 + $0x40] sm:$0xff]
  %v776 = vld [vmem:[#allocation2 + $0x48] sm:$0xff]
  %v777 = vld [vmem:[#allocation2 + $0x50] sm:$0xff]
  %v778 = vld [vmem:[#allocation2 + $0x58] sm:$0xff]
  %v779 = vld [vmem:[#allocation2 + $0x60] sm:$0xff]
  %v780 = vld [vmem:[#allocation2 + $0x68] sm:$0xff]
  %v781 = vld [vmem:[#allocation2 + $0x70] sm:$0xff]
  %v782 = vld [vmem:[#allocation2 + $0x78] sm:$0xff]
  %v783 = vld [vmem:[#allocation2 + $0x80] sm:$0xff]
  %v784 = vld [vmem:[#allocation2 + $0x88] sm:$0xff]
  %v785 = vld [vmem:[#allocation2 + $0x90] sm:$0xff]
  %v786 = vld [vmem:[#allocation2 + $0x98] sm:$0xff]
  %v787 = vld [vmem:[#allocation2 + $0xa0] sm:$0xff]
  %v788 = vld [vmem:[#allocation2 + $0xa8] sm:$0xff]
  %v789 = vld [vmem:[#allocation2 + $0xb0] sm:$0xff]
  %v790 = vld [vmem:[#allocation2 + $0xb8] sm:$0xff]
  %v791 = vld [vmem:[#allocation2 + $0xc0] sm:$0xff]
  %v792 = vld [vmem:[#allocation2 + $0xc8] sm:$0xff]
  %v793 = vld [vmem:[#allocation2 + $0xd0] sm:$0xff]
  %v794 = vld [vmem:[#allocation2 + $0xd8] sm:$0xff]
  %v795 = vld [vmem:[#allocation2 + $0xe0] sm:$0xff]
  %v796 = vld [vmem:[#allocation2 + $0xe8] sm:$0xff]
  %v797 = vld [vmem:[#allocation2 + $0xf0] sm:$0xff]
  %v798 = vld [vmem:[#allocation2 + $0xf8] sm:$0xff]
  %v799 = vld [vmem:[#allocation2 + $0x100] sm:$0xff]
  %v800 = vld [vmem:[#allocation2 + $0x108] sm:$0xff]
  %v801 = vld [vmem:[#allocation2 + $0x110] sm:$0xff]
  %v802 = vld [vmem:[#allocation2 + $0x118] sm:$0xff]
  %v803 = vld [vmem:[%s6] sm:$0xff]
  %805 = vset.pattern.permute.xlu0 0
  %806 = vperm.xlu0 %805, %v803
  %v807 = vpop.permute.xlu0 %806
  %v810 = vsel %vm364, %v766, 0
  %812 = vmatprep.subr.mxu0 %v768
  %813 = vmatpush1.msra.mxu0 %v767
  %814 = vmatprep.subr.mxu0 %v772
  %815 = vmatpush1.msra.mxu0 %v771
  %816 = vmatprep.subr.mxu0 %v776
  %817 = vmatpush1.msra.mxu0 %v775
  %818 = vmatprep.subr.mxu0 %v780
  %819 = vmatpush1.msra.mxu0 %v779
  %820 = vmatprep.subr.mxu0 %v784
  %821 = vmatpush1.msra.mxu0 %v783
  %822 = vmatprep.subr.mxu0 %v788
  %823 = vmatpush1.msra.mxu0 %v787
  %824 = vmatprep.subr.mxu0 %v792
  %825 = vmatpush1.msra.mxu0 %v791
  %826 = vmatprep.subr.mxu0 %v796
  %827 = vmatpush1.msra.mxu0 %v795
  %828 = vmatprep.subr.mxu0 %v800
  %829 = vmatpush1.msra.mxu0 %v799
  %830 = vmatprep.subr.mxu0 0.0
  %831 = vmatpush1.msra.mxu0 0.0
  %832 = vmatprep.subr.mxu0 0.0
  %833 = vmatpush1.msra.mxu0 0.0
  %834 = vmatprep.subr.mxu0 0.0
  %835 = vmatpush1.msra.mxu0 0.0
  %836 = vmatprep.subr.mxu0 0.0
  %837 = vmatpush1.msra.mxu0 0.0
  %838 = vmatprep.subr.mxu0 0.0
  %839 = vmatpush1.msra.mxu0 0.0
  %840 = vmatprep.subr.mxu0 0.0
  %841 = vmatpush1.msra.mxu0 0.0
  %842 = vmatprep.subr.mxu0 0.0
  %843 = vmatpush1.msra.mxu0 0.0
  %844 = vmatprep.subr.mxu0 0.0
  %845 = vmatpush1.msra.mxu0 0.0
  %846 = vmatprep.subr.mxu0 0.0
  %847 = vmatpush1.msra.mxu0 0.0
  %848 = vmatprep.subr.mxu0 0.0
  %849 = vmatpush1.msra.mxu0 0.0
  %850 = vmatprep.subr.mxu0 0.0
  %851 = vmatpush1.msra.mxu0 0.0
  %852 = vmatprep.subr.mxu0 0.0
  %853 = vmatpush1.msra.mxu0 0.0
  %854 = vmatprep.subr.mxu0 0.0
  %855 = vmatpush1.msra.mxu0 0.0
  %856 = vmatprep.subr.mxu0 0.0
  %857 = vmatpush1.msra.mxu0 0.0
  %858 = vmatprep.subr.mxu0 0.0
  %859 = vmatpush1.msra.mxu0 0.0
  %860 = vmatprep.subr.mxu0 0.0
  %861 = vmatpush1.msra.mxu0 0.0
  %862 = vmatprep.subr.mxu0 0.0
  %863 = vmatpush1.msra.mxu0 0.0
  %864 = vmatprep.subr.mxu0 0.0
  %865 = vmatpush1.msra.mxu0 0.0
  %866 = vmatprep.subr.mxu0 0.0
  %867 = vmatpush1.msra.mxu0 0.0
  %868 = vmatprep.subr.mxu0 0.0
  %869 = vmatpush1.msra.mxu0 0.0
  %870 = vmatprep.subr.mxu0 0.0
  %871 = vmatpush1.msra.mxu0 0.0
  %872 = vmatprep.subr.mxu0 0.0
  %873 = vmatpush1.msra.mxu0 0.0
  %874 = vmatprep.subr.mxu0 0.0
  %875 = vmatpush1.msra.mxu0 0.0
  %876 = vmatprep.mubr.f32.mxu0 0.0
  %877 = vmatmul.mubr.f32.gmra.mrb[0].mxu0 %v810
  %v878 = vpop.f32.mrb[0].mxu0
  %v879 = vadd.f32 %v807, %v878
  %v880 = vpop.f32.mrb[0].mxu0
  %v881 = vadd.f32 %v807, %v880
  %882 = vdwg.mxu0
  %883 = vmatprep.subr.mxu0 %v770
  %884 = vmatpush1.msra.mxu0 %v769
  %885 = vmatprep.subr.mxu0 %v774
  %886 = vmatpush1.msra.mxu0 %v773
  %887 = vmatprep.subr.mxu0 %v778
  %888 = vmatpush1.msra.mxu0 %v777
  %889 = vmatprep.subr.mxu0 %v782
  %890 = vmatpush1.msra.mxu0 %v781
  %891 = vmatprep.subr.mxu0 %v786
  %892 = vmatpush1.msra.mxu0 %v785
  %893 = vmatprep.subr.mxu0 %v790
  %894 = vmatpush1.msra.mxu0 %v789
  %895 = vmatprep.subr.mxu0 %v794
  %896 = vmatpush1.msra.mxu0 %v793
  %897 = vmatprep.subr.mxu0 %v798
  %898 = vmatpush1.msra.mxu0 %v797
  %899 = vmatprep.subr.mxu0 %v802
  %900 = vmatpush1.msra.mxu0 %v801
  %901 = vmatprep.subr.mxu0 0.0
  %902 = vmatpush1.msra.mxu0 0.0
  %903 = vmatprep.subr.mxu0 0.0
  %904 = vmatpush1.msra.mxu0 0.0
  %905 = vmatprep.subr.mxu0 0.0
  %906 = vmatpush1.msra.mxu0 0.0
  %907 = vmatprep.subr.mxu0 0.0
  %908 = vmatpush1.msra.mxu0 0.0
  %909 = vmatprep.subr.mxu0 0.0
  %910 = vmatpush1.msra.mxu0 0.0
  %911 = vmatprep.subr.mxu0 0.0
  %912 = vmatpush1.msra.mxu0 0.0
  %913 = vmatprep.subr.mxu0 0.0
  %914 = vmatpush1.msra.mxu0 0.0
  %915 = vmatprep.subr.mxu0 0.0
  %916 = vmatpush1.msra.mxu0 0.0
  %917 = vmatprep.subr.mxu0 0.0
  %918 = vmatpush1.msra.mxu0 0.0
  %919 = vmatprep.subr.mxu0 0.0
  %920 = vmatpush1.msra.mxu0 0.0
  %921 = vmatprep.subr.mxu0 0.0
  %922 = vmatpush1.msra.mxu0 0.0
  %923 = vmatprep.subr.mxu0 0.0
  %924 = vmatpush1.msra.mxu0 0.0
  %925 = vmatprep.subr.mxu0 0.0
  %926 = vmatpush1.msra.mxu0 0.0
  %927 = vmatprep.subr.mxu0 0.0
  %928 = vmatpush1.msra.mxu0 0.0
  %929 = vmatprep.subr.mxu0 0.0
  %930 = vmatpush1.msra.mxu0 0.0
  %931 = vmatprep.subr.mxu0 0.0
  %932 = vmatpush1.msra.mxu0 0.0
  %933 = vmatprep.subr.mxu0 0.0
  %934 = vmatpush1.msra.mxu0 0.0
  %935 = vmatprep.subr.mxu0 0.0
  %936 = vmatpush1.msra.mxu0 0.0
  %937 = vmatprep.subr.mxu0 0.0
  %938 = vmatpush1.msra.mxu0 0.0
  %939 = vmatprep.subr.mxu0 0.0
  %940 = vmatpush1.msra.mxu0 0.0
  %941 = vmatprep.subr.mxu0 0.0
  %942 = vmatpush1.msra.mxu0 0.0
  %943 = vmatprep.subr.mxu0 0.0
  %944 = vmatpush1.msra.mxu0 0.0
  %945 = vmatprep.subr.mxu0 0.0
  %946 = vmatpush1.msra.mxu0 0.0
  %947 = vmatprep.mubr.f32.mxu0 0.0
  %948 = vmatmul.mubr.f32.gmra.mrb[0].mxu0 %v810
  %v949 = vpop.f32.mrb[0].mxu0
  %v950 = vadd.f32 %v807, %v949
  %v951 = vpop.f32.mrb[0].mxu0
  %v952 = vadd.f32 %v807, %v951
  %953 = vdwg.mxu0
  %v954 = vadd.f32 %v879, %v881
  %v955 = vadd.f32 %v954, %v950
  %v956 = vadd.f32 %v955, %v952
  %957 = vadd.xlane.f32.xlu0 %v956
  %v958 = vpop.xlane.xlu0 %957
  %v959 = vmul.f32 %v958, 0.001953125
  %v960 = vmul.f32 %v879, %v879
  %v961 = vmul.f32 %v881, %v881
  %v962 = vmul.f32 %v950, %v950
  %v963 = vmul.f32 %v952, %v952
  %v964 = vadd.f32 %v960, %v961
  %v965 = vadd.f32 %v964, %v962
  %v966 = vadd.f32 %v965, %v963
  %967 = vadd.xlane.f32.xlu0 %v966
  %v968 = vpop.xlane.xlu0 %967
  %v969 = vmul.f32 %v968, 0.001953125
  %v970 = vmul.f32 %v959, %v959
  %v971 = vsub.f32 %v969, %v970
  %v972 = vsub.f32 %v879, %v959
  %v973 = vsub.f32 %v881, %v959
  %v974 = vsub.f32 %v950, %v959
  %v975 = vsub.f32 %v952, %v959
  %v976 = vadd.f32 %v971, 1e-05
  %v977 = vrsqrt.pop %v976
  %v978 = vmul.f32 %v972, %v977
  %v979 = vmul.f32 %v973, %v977
  %v980 = vmul.f32 %v974, %v977
  %v981 = vmul.f32 %v975, %v977
  %v982 = vld [vmem:[%s7] sm:$0xff]
  %984 = vset.pattern.permute.xlu0 0
  %985 = vperm.xlu0 %984, %v982
  %v986 = vpop.permute.xlu0 %985
  %v988 = vmul.f32 %v978, %v986
  %v989 = vmul.f32 %v979, %v986
  %v990 = vmul.f32 %v980, %v986
  %v991 = vmul.f32 %v981, %v986
  %v992 = vld [vmem:[%s8] sm:$0xff]
  %994 = vset.pattern.permute.xlu0 0
  %995 = vperm.xlu0 %994, %v992
  %v996 = vpop.permute.xlu0 %995
  %v998 = vadd.f32 %v988, %v996
  %v999 = vadd.f32 %v989, %v996
  %v1000 = vadd.f32 %v990, %v996
  %v1001 = vadd.f32 %v991, %v996
  %v1002 = vadd.f32 %v998, %v98
  %v1003 = vadd.f32 %v999, %v99
  %v1004 = vadd.f32 %v1000, %v100
  %v1005 = vadd.f32 %v1001, %v101
  %vm1006 = vcmp.ge.f32.partialorder %v1002, 0.0
  %vm1007 = vcmp.ge.f32.partialorder %v1003, 0.0
  %vm1008 = vcmp.ge.f32.partialorder %v1004, 0.0
  %vm1009 = vcmp.ge.f32.partialorder %v1005, 0.0
  %v1010 = vmul.f32 %v1002, 0.01
  %v1011 = vmul.f32 %v1003, 0.01
  %v1012 = vmul.f32 %v1004, 0.01
  %v1013 = vmul.f32 %v1005, 0.01
  %v1014 = vsel %vm1006, %v1002, %v1010
  %v1015 = vsel %vm1007, %v1003, %v1011
  %v1016 = vsel %vm1008, %v1004, %v1012
  %v1017 = vsel %vm1009, %v1005, %v1013
  %1018 = vst [vmem:[%s9] sm:$0xff] %v1014
  %1019 = vst [vmem:[%s9 + $0x8] sm:$0xff] %v1015
  %1020 = vst [vmem:[%s9 + $0x10] sm:$0xff] %v1016
  %1021 = vst [vmem:[%s9 + $0x18] sm:$0xff] %v1017
  // Predicated region
  $region38: #{residual_block.1} parent=0 // pred_check
    _
  $region39: #{residual_block.1} parent=0 // pred_check_branch
    %1023 = sbr.rel (0) target = $region41
  $region40: #{residual_block.1} parent=0 // pred_region
    _
  $region41: #{residual_block.1} parent=0 // pred_fallthru
    _
  // Predicated region
  $region42: #{residual_block.1} parent=0 // pred_check
    _
  $region43: #{residual_block.1} parent=0 // pred_check_branch
    %1025 = sbr.rel (0) target = $region45
  $region44: #{residual_block.1} parent=0 // pred_region
    _
  $region45: #{residual_block.1} parent=0 // pred_fallthru
    _

</llo_original>
